<compile_context>
chip_gen: v7x
topology: tpu7x:2x2x1
jax: 0.10.0
libtpu: 0.0.40
codegen_flags: <defaults>
</compile_context>

<pallas_src>
import jax
import jax.numpy as jnp
from jax.experimental import pallas as pl
from jax.experimental.pallas import tpu as pltpu


def _round_up(n, m):
    return ((n + m - 1) // m) * m


def _make_mlp_kernel(h1, h2, out_pad):
    """Fused 3-layer MLP kernel. Bias buffer is packed [b1 | b2 | b3_pad]."""
    o1, o2, o3 = 0, h1, h1 + h2

    def kernel(x_ref, w1_ref, w2_ref, w3_ref, b_ref, o_ref):
        bf16 = jnp.bfloat16
        # Layer 1: Linear(in_pad, 512) + ReLU   (bf16 x bf16 -> f32 acc on MXU)
        a1 = jnp.dot(x_ref[...], w1_ref[...], preferred_element_type=jnp.float32)
        a1 = jnp.maximum(a1 + b_ref[:, o1:o1 + h1], 0.0)       # f32 VPU
        # Layer 2: Linear(512, 256) + ReLU
        a2 = jnp.dot(a1.astype(bf16), w2_ref[...],
                     preferred_element_type=jnp.float32)
        a2 = jnp.maximum(a2 + b_ref[:, o2:o2 + h2], 0.0)
        # Layer 3: Linear(256, out_pad)
        a3 = jnp.dot(a2.astype(bf16), w3_ref[...],
                     preferred_element_type=jnp.float32)
        o_ref[...] = (a3 + b_ref[:, o3:o3 + out_pad]).astype(o_ref.dtype)

    return kernel


def prepare_params(params, *, lane=128):
    """One-time preprocessing, hoisted out of the per-forward hot path."""
    w1, w2, w3 = params["w1"], params["w2"], params["w3"]
    b1, b2, b3 = params["b1"], params["b2"], params["b3"]
    in_size, h1 = w1.shape
    h2 = w2.shape[1]
    out_size = w3.shape[1]

    in_pad = _round_up(in_size, lane)
    out_pad = _round_up(out_size, lane)

    bf16 = jnp.bfloat16
    w1p = jnp.pad(w1, ((0, in_pad - in_size), (0, 0))).astype(bf16)
    w2p = w2.astype(bf16)
    w3p = jnp.pad(w3, ((0, 0), (0, out_pad - out_size))).astype(bf16)
    b3p = jnp.pad(b3, ((0, 0), (0, out_pad - out_size)))
    b_packed = jnp.concatenate([b1, b2, b3p], axis=1).astype(jnp.float32)

    return dict(w1=w1p, w2=w2p, w3=w3p, b=b_packed,
                in_size=in_size, in_pad=in_pad,
                h1=h1, h2=h2, out_size=out_size, out_pad=out_pad)


def mnist_nn_forward(x, prep, *, num_batch_tiles=1):
    """Forward pass.  x: [B, in_size] (f32 or bf16).  prep: prepare_params(...).

    num_batch_tiles=1 -> single grid step (best on 1-TC v5e/v6e).
    num_batch_tiles=2 -> one step per TensorCore on v7x megacore.
    """
    B, in_size = x.shape
    assert in_size == prep["in_size"], "input width mismatch"
    in_pad, out_pad = prep["in_pad"], prep["out_pad"]
    h1, h2, out_size = prep["h1"], prep["h2"], prep["out_size"]
    w1, w2, w3, b = prep["w1"], prep["w2"], prep["w3"], prep["b"]

    # Batch tiling: TB rows per grid step, multiple of 16 (bf16 sublane tile).
    tiles = max(1, int(num_batch_tiles))
    TB = _round_up(pl.cdiv(B, tiles), 16)
    Bp = TB * tiles

    # Single fused wrapper op: cast x to bf16 + zero-pad batch and K dims.
    xp = jnp.pad(x.astype(jnp.bfloat16),
                 ((0, Bp - B), (0, in_pad - in_size)))

    def stream(shape):       # per-batch-tile blocks (x, out)
        return pl.BlockSpec(shape, lambda i: (i, 0))

    def resident(a):         # same block every step: DMA'd once, single-buffered
        return pl.BlockSpec(a.shape, lambda i: (0, 0),
                            pipeline_mode=pl.Buffered(1))

    # VMEM budget derived from the actual footprint; clamped so the same
    # number is safe on v7x (64 MiB physical) and v5e/v6e (128 MiB).
    w_bytes = sum(int(a.size) * a.dtype.itemsize for a in (w1, w2, w3, b))
    vmem_est = (2 * TB * in_pad * 2        # double-buffered bf16 x tile
                + 2 * TB * out_pad * 4     # double-buffered f32 out tile
                + w_bytes                  # single-buffered resident operands
                + 2 * TB * (h1 + h2) * 4   # h1/h2 activations + Mosaic scratch
                + (2 << 20))               # slack
    vmem_limit = int(min(max(vmem_est, 16 << 20), 48 << 20))

    flops = 2 * Bp * (in_pad * h1 + h1 * h2 + h2 * out_pad)
    bytes_accessed = int(xp.size * xp.dtype.itemsize
                         + w_bytes
                         + Bp * out_pad * 4)

    out = pl.pallas_call(
        _make_mlp_kernel(h1, h2, out_pad),
        out_shape=jax.ShapeDtypeStruct((Bp, out_pad), jnp.float32),
        grid=(tiles,),
        in_specs=[stream((TB, in_pad)),
                  resident(w1), resident(w2), resident(w3), resident(b)],
        out_specs=stream((TB, out_pad)),
        compiler_params=pltpu.CompilerParams(
            dimension_semantics=("parallel",),
            vmem_limit_bytes=vmem_limit),
        cost_estimate=pl.CostEstimate(flops=flops, transcendentals=0,
                                      bytes_accessed=bytes_accessed),
    )(xp, w1, w2, w3, b)
    return out[:B, :out_size]


def init_params(key, input_size, output_size):
    """Deterministic PyTorch-style (uniform +/- 1/sqrt(fan_in)) init, f32."""
    dims = [(input_size, 512), (512, 256), (256, output_size)]
    params = {}
    for i, (fan_in, fan_out) in enumerate(dims, start=1):
        key, kw, kb = jax.random.split(key, 3)
        bound = 1.0 / jnp.sqrt(jnp.float32(fan_in))
        params[f"w{i}"] = jax.random.uniform(
            kw, (fan_in, fan_out), jnp.float32, -bound, bound)
        params[f"b{i}"] = jax.random.uniform(
            kb, (1, fan_out), jnp.float32, -bound, bound)
    return params


def reference_forward_mixed(x, p):
    """Same arithmetic as the kernel (bf16 MXU inputs, f32 accumulate)."""
    bf = jnp.bfloat16
    h1 = jnp.maximum(jnp.dot(x.astype(bf), p["w1"].astype(bf),
                             preferred_element_type=jnp.float32) + p["b1"], 0.0)
    h2 = jnp.maximum(jnp.dot(h1.astype(bf), p["w2"].astype(bf),
                             preferred_element_type=jnp.float32) + p["b2"], 0.0)
    return jnp.dot(h2.astype(bf), p["w3"].astype(bf),
                   preferred_element_type=jnp.float32) + p["b3"]


def reference_forward_f32(x, p):
    h1 = jnp.maximum(x @ p["w1"] + p["b1"], 0.0)
    h2 = jnp.maximum(h1 @ p["w2"] + p["b2"], 0.0)
    return h2 @ p["w3"] + p["b3"]


if __name__ == "__main__":
    input_size, output_size = 784, 10  # MNIST: 28*28 flattened -> 10 classes

    key = jax.random.PRNGKey(0)
    key, kx1, kx2 = jax.random.split(key, 3)
    params = init_params(key, input_size, output_size)
    prep = prepare_params(params)      # one-time prep, outside the hot path

    # Small single-tile call (batch=8 -> one grid step, best for v5e/v6e).
    x_small = jax.random.normal(kx1, (8, input_size), jnp.float32)
    out_small = jax.block_until_ready(mnist_nn_forward(x_small, prep))

    # Two-tile call: one "parallel" grid step per TensorCore (v7x megacore),
    # weights/biases stay VMEM-resident and single-buffered.
    x_big = jax.random.normal(kx2, (48, input_size), jnp.float32)
    out_big = jax.block_until_ready(
        mnist_nn_forward(x_big, prep, num_batch_tiles=2))

    for x, out in ((x_small, out_small), (x_big, out_big)):
        assert out.shape == (x.shape[0], output_size)
        ref_mixed = reference_forward_mixed(x, params)
        assert jnp.allclose(out, ref_mixed, atol=1e-3, rtol=1e-3), \
            "mismatch vs mixed-precision reference"
        ref_f32 = reference_forward_f32(x, params)
        assert jnp.allclose(out, ref_f32, atol=1e-1, rtol=1e-1), \
            "mismatch vs f32 reference beyond bf16 tolerance"

    print("KERNEL_OK")
</pallas_src>

<mosaic_0001>
module attributes {stable_mosaic.version = 11 : i64} {
  func.func @kernel(%arg0: i32, %arg1: memref<16x896xbf16, #tpu.memory_space<vmem>>, %arg2: memref<896x512xbf16, #tpu.memory_space<vmem>>, %arg3: memref<512x256xbf16, #tpu.memory_space<vmem>>, %arg4: memref<256x128xbf16, #tpu.memory_space<vmem>>, %arg5: memref<1x896xf32, #tpu.memory_space<vmem>>, %arg6: memref<16x128xf32, #tpu.memory_space<vmem>>) attributes {dimension_semantics = [#tpu.dimension_semantics<parallel>], iteration_bounds = array<i64: 1>, scalar_prefetch = 0 : i64, scratch_operands = 0 : i64, tpu.core_type = #tpu.core_type<tc>, window_params = [{transform_indices = @transform_0, window_bounds = array<i64: 16, 896>}, {pipeline_mode = #tpu.pipeline_mode<synchronous>, transform_indices = @transform_1, window_bounds = array<i64: 896, 512>}, {pipeline_mode = #tpu.pipeline_mode<synchronous>, transform_indices = @transform_2, window_bounds = array<i64: 512, 256>}, {pipeline_mode = #tpu.pipeline_mode<synchronous>, transform_indices = @transform_3, window_bounds = array<i64: 256, 128>}, {pipeline_mode = #tpu.pipeline_mode<synchronous>, transform_indices = @transform_4, window_bounds = array<i64: 1, 896>}, {transform_indices = @transform_5, window_bounds = array<i64: 16, 128>}]} {
    %c0 = arith.constant 0 : index
    %c0_0 = arith.constant 0 : index
    %0 = vector.load %arg1[%c0, %c0_0] : memref<16x896xbf16, #tpu.memory_space<vmem>>, vector<16x896xbf16>
    %c0_1 = arith.constant 0 : index
    %c0_2 = arith.constant 0 : index
    %1 = vector.load %arg2[%c0_1, %c0_2] : memref<896x512xbf16, #tpu.memory_space<vmem>>, vector<896x512xbf16>
    %cst = arith.constant dense<0.000000e+00> : vector<16x512xf32>
    %2 = tpu.matmul %0, %1, %cst {dimension_numbers = #tpu.dot_dimension_numbers<[1], [0], [0], [1], [0, 0, 1, 1], [], []>} : vector<16x896xbf16>, vector<896x512xbf16>, vector<16x512xf32> -> vector<16x512xf32>
    %c0_3 = arith.constant 0 : index
    %c0_4 = arith.constant 0 : index
    %3 = vector.load %arg5[%c0_3, %c0_4] : memref<1x896xf32, #tpu.memory_space<vmem>>, vector<1x512xf32>
    %4 = vector.broadcast %3 : vector<1x512xf32> to vector<16x512xf32>
    %5 = arith.addf %2, %4 : vector<16x512xf32>
    %cst_5 = arith.constant 0.000000e+00 : f32
    %6 = vector.broadcast %cst_5 : f32 to vector<16x512xf32>
    %7 = arith.maximumf %5, %6 : vector<16x512xf32>
    %8 = arith.truncf %7 : vector<16x512xf32> to vector<16x512xbf16>
    %c0_6 = arith.constant 0 : index
    %c0_7 = arith.constant 0 : index
    %9 = vector.load %arg3[%c0_6, %c0_7] : memref<512x256xbf16, #tpu.memory_space<vmem>>, vector<512x256xbf16>
    %cst_8 = arith.constant dense<0.000000e+00> : vector<16x256xf32>
    %10 = tpu.matmul %8, %9, %cst_8 {dimension_numbers = #tpu.dot_dimension_numbers<[1], [0], [0], [1], [0, 0, 1, 1], [], []>} : vector<16x512xbf16>, vector<512x256xbf16>, vector<16x256xf32> -> vector<16x256xf32>
    %c0_9 = arith.constant 0 : index
    %c512 = arith.constant 512 : index
    %11 = vector.load %arg5[%c0_9, %c512] : memref<1x896xf32, #tpu.memory_space<vmem>>, vector<1x256xf32>
    %12 = vector.broadcast %11 : vector<1x256xf32> to vector<16x256xf32>
    %13 = arith.addf %10, %12 : vector<16x256xf32>
    %cst_10 = arith.constant 0.000000e+00 : f32
    %14 = vector.broadcast %cst_10 : f32 to vector<16x256xf32>
    %15 = arith.maximumf %13, %14 : vector<16x256xf32>
    %16 = arith.truncf %15 : vector<16x256xf32> to vector<16x256xbf16>
    %c0_11 = arith.constant 0 : index
    %c0_12 = arith.constant 0 : index
    %17 = vector.load %arg4[%c0_11, %c0_12] : memref<256x128xbf16, #tpu.memory_space<vmem>>, vector<256x128xbf16>
    %cst_13 = arith.constant dense<0.000000e+00> : vector<16x128xf32>
    %18 = tpu.matmul %16, %17, %cst_13 {dimension_numbers = #tpu.dot_dimension_numbers<[1], [0], [0], [1], [0, 0, 1, 1], [], []>} : vector<16x256xbf16>, vector<256x128xbf16>, vector<16x128xf32> -> vector<16x128xf32>
    %c0_14 = arith.constant 0 : index
    %c768 = arith.constant 768 : index
    %19 = vector.load %arg5[%c0_14, %c768] : memref<1x896xf32, #tpu.memory_space<vmem>>, vector<1x128xf32>
    %20 = vector.broadcast %19 : vector<1x128xf32> to vector<16x128xf32>
    %21 = arith.addf %18, %20 : vector<16x128xf32>
    %c0_15 = arith.constant 0 : index
    %c0_16 = arith.constant 0 : index
    %22 = vector.load %arg6[%c0_15, %c0_16] : memref<16x128xf32, #tpu.memory_space<vmem>>, vector<16x128xf32>
    tpu.vector_store %arg6[%c0_15, %c0_16], %21 {strides = array<i32>} : memref<16x128xf32, #tpu.memory_space<vmem>>, vector<16x128xf32>,
    return
  }
  func.func @transform_0(%arg0: i32) -> (i32, i32) {
    %c0_i32 = arith.constant 0 : i32
    %c0_i32_0 = arith.constant 0 : i32
    return %arg0, %c0_i32 : i32, i32
  }
  func.func @transform_1(%arg0: i32) -> (i32, i32) {
    %c0_i32 = arith.constant 0 : i32
    %c0_i32_0 = arith.constant 0 : i32
    %c0_i32_1 = arith.constant 0 : i32
    return %c0_i32, %c0_i32_0 : i32, i32
  }
  func.func @transform_2(%arg0: i32) -> (i32, i32) {
    %c0_i32 = arith.constant 0 : i32
    %c0_i32_0 = arith.constant 0 : i32
    %c0_i32_1 = arith.constant 0 : i32
    return %c0_i32, %c0_i32_0 : i32, i32
  }
  func.func @transform_3(%arg0: i32) -> (i32, i32) {
    %c0_i32 = arith.constant 0 : i32
    %c0_i32_0 = arith.constant 0 : i32
    %c0_i32_1 = arith.constant 0 : i32
    return %c0_i32, %c0_i32_0 : i32, i32
  }
  func.func @transform_4(%arg0: i32) -> (i32, i32) {
    %c0_i32 = arith.constant 0 : i32
    %c0_i32_0 = arith.constant 0 : i32
    %c0_i32_1 = arith.constant 0 : i32
    return %c0_i32, %c0_i32_0 : i32, i32
  }
  func.func @transform_5(%arg0: i32) -> (i32, i32) {
    %c0_i32 = arith.constant 0 : i32
    %c0_i32_0 = arith.constant 0 : i32
    return %arg0, %c0_i32 : i32, i32
  }
}

</mosaic_0001>

<llo_original>
// kernel: tpu_custom_call.1
$region0: #{tpu_custom_call.1}
  #allocation0 [shape = 'u32[]', space=smem, size = 0x4, offset = 0x4, fixed_abs, tag = 'smem constant byte address 0x4 - core index']
  #allocation1 [shape = 'u32[144,128]{1,0:T(1,128)}', space=vmem, size = 0x12000, scoped, tag = 'internal scratch']
  %s0 = inlined_call_operand.hbm [shape: bf16[16,896], index: 0, kind: input, shape index: {}]
  %s1 = inlined_call_operand.hbm [shape: bf16[896,512], index: 1, kind: input, shape index: {}]
  %s2 = inlined_call_operand.hbm [shape: bf16[512,256], index: 2, kind: input, shape index: {}]
  %s3 = inlined_call_operand.hbm [shape: bf16[256,128], index: 3, kind: input, shape index: {}]
  %s4 = inlined_call_operand.vmem [shape: f32[1,896], index: 4, kind: input, shape index: {}]
  %s5 = inlined_call_operand.hbm [shape: f32[16,128], index: 5, kind: output, shape index: {}]
  %s6 = sld [smem:[#allocation0]]
  $region46: #{tpu_custom_call.1} parent=0
    _
  %s8 = ssub.s32 1, %s6
  %s9 = scalar_select 0, %s8, %s6
  $region1: #{tpu_custom_call.1} parent=0
    #allocation2 [shape = 'u8[28672]{0}', space=vmem, size = 0x7000, scoped, tag = 'input window, operand 0, single buffered']
    #allocation3 [shape = 's32[1]{0}', space=sflag, size = 0x4, scoped, tag = 'scoped memory for tpu_custom_call.1']
    #allocation4 [shape = 's32[1]{0}', space=sflag, size = 0x4, scoped, tag = 'scoped memory for tpu_custom_call.1']
    #allocation5 [shape = 'u8[917504]{0}', space=vmem, size = 0xe0000, scoped, tag = 'input window, operand 1, single buffered']
    #allocation6 [shape = 's32[1]{0}', space=sflag, size = 0x4, scoped, tag = 'scoped memory for tpu_custom_call.1']
    #allocation7 [shape = 'u8[262144]{0}', space=vmem, size = 0x40000, scoped, tag = 'input window, operand 2, single buffered']
    #allocation8 [shape = 'u8[65536]{0}', space=vmem, size = 0x10000, scoped, tag = 'input window, operand 3, single buffered']
    #allocation9 [shape = 's32[1]{0}', space=sflag, size = 0x4, scoped, tag = 'scoped memory for tpu_custom_call.1']
    #allocation10 [shape = 'u8[8192]{0}', space=vmem, size = 0x2000, scoped, tag = 'output window, operand 0, single buffered']
    %10 = vsyncpa [#allocation3], 0
    %11 = vsyncpa [#allocation6], 0
    %12 = vsyncpa [#allocation9], 0
    %13 = vsyncpa [#allocation4], 0
    // Predicated region
    $region2: #{tpu_custom_call.1} parent=1 // pred_check
      _
    $region3: #{tpu_custom_call.1} parent=1 // pred_check_branch
      %15 = sbr.rel (0) target = $region5
    $region4: #{tpu_custom_call.1} parent=1 // pred_region
      %s17 = ssub.s32 896, 896
      %18 = vsyncadd [#allocation3], %s17
      %s19 = sshll.u32 [#allocation2], 4
      %s20 = int_to_ptr.vmem [resolvable:$true] %s19
      %25 = dma.hbm_to_vmem [thread:$0]  %s0, 896, %s20, [#allocation3], 448, 448, 28
    $region5: #{tpu_custom_call.1} parent=1 // pred_fallthru
      _
    // Predicated region
    $region6: #{tpu_custom_call.1} parent=1 // pred_check
      _
    $region7: #{tpu_custom_call.1} parent=1 // pred_check_branch
      %27 = sbr.rel (0) target = $region9
    $region8: #{tpu_custom_call.1} parent=1 // pred_region
      %s29 = ssub.s32 28672, 28672
      %30 = vsyncadd [#allocation6], %s29
      %s31 = sshll.u32 [#allocation5], 4
      %s32 = int_to_ptr.vmem [resolvable:$true] %s31
      %37 = dma.hbm_to_vmem [thread:$0]  %s1, 28672, %s32, [#allocation6], 256, 256, 16
    $region9: #{tpu_custom_call.1} parent=1 // pred_fallthru
      _
    // Predicated region
    $region10: #{tpu_custom_call.1} parent=1 // pred_check
      _
    $region11: #{tpu_custom_call.1} parent=1 // pred_check_branch
      %39 = sbr.rel (0) target = $region13
    $region12: #{tpu_custom_call.1} parent=1 // pred_region
      %s41 = ssub.s32 8192, 8192
      %42 = vsyncadd [#allocation6], %s41
      %s43 = sshll.u32 [#allocation7], 4
      %s44 = int_to_ptr.vmem [resolvable:$true] %s43
      %49 = dma.hbm_to_vmem [thread:$0]  %s2, 8192, %s44, [#allocation6], 128, 128, 8
    $region13: #{tpu_custom_call.1} parent=1 // pred_fallthru
      _
    // Predicated region
    $region14: #{tpu_custom_call.1} parent=1 // pred_check
      _
    $region15: #{tpu_custom_call.1} parent=1 // pred_check_branch
      %51 = sbr.rel (0) target = $region17
    $region16: #{tpu_custom_call.1} parent=1 // pred_region
      %s53 = ssub.s32 2048, 2048
      %54 = vsyncadd [#allocation9], %s53
      %s55 = sshll.u32 [#allocation8], 4
      %s56 = int_to_ptr.vmem [resolvable:$true] %s55
      %61 = dma.hbm_to_vmem [thread:$0]  %s3, 2048, %s56, [#allocation9], 64, 64, 4
    $region17: #{tpu_custom_call.1} parent=1 // pred_fallthru
      _
    // Predicated region
    $region18: #{tpu_custom_call.1} parent=1 // pred_check
      _
    $region19: #{tpu_custom_call.1} parent=1 // pred_check_branch
      %63 = sbr.rel (0) target = $region21
    $region20: #{tpu_custom_call.1} parent=1 // pred_region
      _
    $region21: #{tpu_custom_call.1} parent=1 // pred_fallthru
      _
    // Predicated region
    $region22: #{tpu_custom_call.1} parent=1 // pred_check
      _
    $region23: #{tpu_custom_call.1} parent=1 // pred_check_branch
      %65 = sbr.rel (0) target = $region25
    $region24: #{tpu_custom_call.1} parent=1 // pred_region
      %66 = dma.done [#allocation3], 896
    $region25: #{tpu_custom_call.1} parent=1 // pred_fallthru
      _
    // Predicated region
    $region26: #{tpu_custom_call.1} parent=1 // pred_check
      _
    $region27: #{tpu_custom_call.1} parent=1 // pred_check_branch
      %68 = sbr.rel (0) target = $region29
    $region28: #{tpu_custom_call.1} parent=1 // pred_region
      %69 = dma.done [#allocation6], 28672
    $region29: #{tpu_custom_call.1} parent=1 // pred_fallthru
      _
    // Predicated region
    $region30: #{tpu_custom_call.1} parent=1 // pred_check
      _
    $region31: #{tpu_custom_call.1} parent=1 // pred_check_branch
      %71 = sbr.rel (0) target = $region33
    $region32: #{tpu_custom_call.1} parent=1 // pred_region
      %72 = dma.done [#allocation6], 8192
    $region33: #{tpu_custom_call.1} parent=1 // pred_fallthru
      _
    // Predicated region
    $region34: #{tpu_custom_call.1} parent=1 // pred_check
      _
    $region35: #{tpu_custom_call.1} parent=1 // pred_check_branch
      %74 = sbr.rel (0) target = $region37
    $region36: #{tpu_custom_call.1} parent=1 // pred_region
      %75 = dma.done [#allocation9], 2048
    $region37: #{tpu_custom_call.1} parent=1 // pred_fallthru
      _
    %v77 = vld [vmem:[#allocation2] sm:$0xff]
    %v78 = vld [vmem:[#allocation2 + $0x8] sm:$0xff]
    %v79 = vld [vmem:[#allocation2 + $0x10] sm:$0xff]
    %v80 = vld [vmem:[#allocation2 + $0x18] sm:$0xf]
    %v81 = vld [vmem:[#allocation2 + $0x1c] sm:$0xff]
    %v82 = vld [vmem:[#allocation2 + $0x24] sm:$0xff]
    %v83 = vld [vmem:[#allocation2 + $0x2c] sm:$0xff]
    %v84 = vld [vmem:[#allocation2 + $0x34] sm:$0xf]
    %v85 = vld [vmem:[#allocation5] sm:$0xff]
    %v86 = vld [vmem:[#allocation5 + $0x8] sm:$0xff]
    %v87 = vld [vmem:[#allocation5 + $0x10] sm:$0xff]
    %v88 = vld [vmem:[#allocation5 + $0x18] sm:$0xff]
    %v89 = vld [vmem:[#allocation5 + $0x20] sm:$0xff]
    %v90 = vld [vmem:[#allocation5 + $0x28] sm:$0xff]
    %v91 = vld [vmem:[#allocation5 + $0x30] sm:$0xff]
    %v92 = vld [vmem:[#allocation5 + $0x38] sm:$0xff]
    %v93 = vld [vmem:[#allocation5 + $0x40] sm:$0xff]
    %v94 = vld [vmem:[#allocation5 + $0x48] sm:$0xff]
    %v95 = vld [vmem:[#allocation5 + $0x50] sm:$0xff]
    %v96 = vld [vmem:[#allocation5 + $0x58] sm:$0xff]
    %v97 = vld [vmem:[#allocation5 + $0x60] sm:$0xff]
    %v98 = vld [vmem:[#allocation5 + $0x68] sm:$0xff]
    %v99 = vld [vmem:[#allocation5 + $0x70] sm:$0xff]
    %v100 = vld [vmem:[#allocation5 + $0x78] sm:$0xff]
    %v101 = vld [vmem:[#allocation5 + $0x80] sm:$0xff]
    %v102 = vld [vmem:[#allocation5 + $0x88] sm:$0xff]
    %v103 = vld [vmem:[#allocation5 + $0x90] sm:$0xff]
    %v104 = vld [vmem:[#allocation5 + $0x98] sm:$0xff]
    %v105 = vld [vmem:[#allocation5 + $0xa0] sm:$0xff]
    %v106 = vld [vmem:[#allocation5 + $0xa8] sm:$0xff]
    %v107 = vld [vmem:[#allocation5 + $0xb0] sm:$0xff]
    %v108 = vld [vmem:[#allocation5 + $0xb8] sm:$0xff]
    %v109 = vld [vmem:[#allocation5 + $0xc0] sm:$0xff]
    %v110 = vld [vmem:[#allocation5 + $0xc8] sm:$0xff]
    %v111 = vld [vmem:[#allocation5 + $0xd0] sm:$0xff]
    %v112 = vld [vmem:[#allocation5 + $0xd8] sm:$0xff]
    %v113 = vld [vmem:[#allocation5 + $0xe0] sm:$0xff]
    %v114 = vld [vmem:[#allocation5 + $0xe8] sm:$0xff]
    %v115 = vld [vmem:[#allocation5 + $0xf0] sm:$0xff]
    %v116 = vld [vmem:[#allocation5 + $0xf8] sm:$0xff]
    %v117 = vld [vmem:[#allocation5 + $0x100] sm:$0xff]
    %v118 = vld [vmem:[#allocation5 + $0x108] sm:$0xff]
    %v119 = vld [vmem:[#allocation5 + $0x110] sm:$0xff]
    %v120 = vld [vmem:[#allocation5 + $0x118] sm:$0xff]
    %v121 = vld [vmem:[#allocation5 + $0x120] sm:$0xff]
    %v122 = vld [vmem:[#allocation5 + $0x128] sm:$0xff]
    %v123 = vld [vmem:[#allocation5 + $0x130] sm:$0xff]
    %v124 = vld [vmem:[#allocation5 + $0x138] sm:$0xff]
    %v125 = vld [vmem:[#allocation5 + $0x140] sm:$0xff]
    %v126 = vld [vmem:[#allocation5 + $0x148] sm:$0xff]
    %v127 = vld [vmem:[#allocation5 + $0x150] sm:$0xff]
    %v128 = vld [vmem:[#allocation5 + $0x158] sm:$0xff]
    %v129 = vld [vmem:[#allocation5 + $0x160] sm:$0xff]
    %v130 = vld [vmem:[#allocation5 + $0x168] sm:$0xff]
    %v131 = vld [vmem:[#allocation5 + $0x170] sm:$0xff]
    %v132 = vld [vmem:[#allocation5 + $0x178] sm:$0xff]
    %v133 = vld [vmem:[#allocation5 + $0x180] sm:$0xff]
    %v134 = vld [vmem:[#allocation5 + $0x188] sm:$0xff]
    %v135 = vld [vmem:[#allocation5 + $0x190] sm:$0xff]
    %v136 = vld [vmem:[#allocation5 + $0x198] sm:$0xff]
    %v137 = vld [vmem:[#allocation5 + $0x1a0] sm:$0xff]
    %v138 = vld [vmem:[#allocation5 + $0x1a8] sm:$0xff]
    %v139 = vld [vmem:[#allocation5 + $0x1b0] sm:$0xff]
    %v140 = vld [vmem:[#allocation5 + $0x1b8] sm:$0xff]
    %v141 = vld [vmem:[#allocation5 + $0x1c0] sm:$0xff]
    %v142 = vld [vmem:[#allocation5 + $0x1c8] sm:$0xff]
    %v143 = vld [vmem:[#allocation5 + $0x1d0] sm:$0xff]
    %v144 = vld [vmem:[#allocation5 + $0x1d8] sm:$0xff]
    %v145 = vld [vmem:[#allocation5 + $0x1e0] sm:$0xff]
    %v146 = vld [vmem:[#allocation5 + $0x1e8] sm:$0xff]
    %v147 = vld [vmem:[#allocation5 + $0x1f0] sm:$0xff]
    %v148 = vld [vmem:[#allocation5 + $0x1f8] sm:$0xff]
    %v149 = vld [vmem:[#allocation5 + $0x200] sm:$0xff]
    %v150 = vld [vmem:[#allocation5 + $0x208] sm:$0xff]
    %v151 = vld [vmem:[#allocation5 + $0x210] sm:$0xff]
    %v152 = vld [vmem:[#allocation5 + $0x218] sm:$0xff]
    %v153 = vld [vmem:[#allocation5 + $0x220] sm:$0xff]
    %v154 = vld [vmem:[#allocation5 + $0x228] sm:$0xff]
    %v155 = vld [vmem:[#allocation5 + $0x230] sm:$0xff]
    %v156 = vld [vmem:[#allocation5 + $0x238] sm:$0xff]
    %v157 = vld [vmem:[#allocation5 + $0x240] sm:$0xff]
    %v158 = vld [vmem:[#allocation5 + $0x248] sm:$0xff]
    %v159 = vld [vmem:[#allocation5 + $0x250] sm:$0xff]
    %v160 = vld [vmem:[#allocation5 + $0x258] sm:$0xff]
    %v161 = vld [vmem:[#allocation5 + $0x260] sm:$0xff]
    %v162 = vld [vmem:[#allocation5 + $0x268] sm:$0xff]
    %v163 = vld [vmem:[#allocation5 + $0x270] sm:$0xff]
    %v164 = vld [vmem:[#allocation5 + $0x278] sm:$0xff]
    %v165 = vld [vmem:[#allocation5 + $0x280] sm:$0xff]
    %v166 = vld [vmem:[#allocation5 + $0x288] sm:$0xff]
    %v167 = vld [vmem:[#allocation5 + $0x290] sm:$0xff]
    %v168 = vld [vmem:[#allocation5 + $0x298] sm:$0xff]
    %v169 = vld [vmem:[#allocation5 + $0x2a0] sm:$0xff]
    %v170 = vld [vmem:[#allocation5 + $0x2a8] sm:$0xff]
    %v171 = vld [vmem:[#allocation5 + $0x2b0] sm:$0xff]
    %v172 = vld [vmem:[#allocation5 + $0x2b8] sm:$0xff]
    %v173 = vld [vmem:[#allocation5 + $0x2c0] sm:$0xff]
    %v174 = vld [vmem:[#allocation5 + $0x2c8] sm:$0xff]
    %v175 = vld [vmem:[#allocation5 + $0x2d0] sm:$0xff]
    %v176 = vld [vmem:[#allocation5 + $0x2d8] sm:$0xff]
    %v177 = vld [vmem:[#allocation5 + $0x2e0] sm:$0xff]
    %v178 = vld [vmem:[#allocation5 + $0x2e8] sm:$0xff]
    %v179 = vld [vmem:[#allocation5 + $0x2f0] sm:$0xff]
    %v180 = vld [vmem:[#allocation5 + $0x2f8] sm:$0xff]
    %v181 = vld [vmem:[#allocation5 + $0x300] sm:$0xff]
    %v182 = vld [vmem:[#allocation5 + $0x308] sm:$0xff]
    %v183 = vld [vmem:[#allocation5 + $0x310] sm:$0xff]
    %v184 = vld [vmem:[#allocation5 + $0x318] sm:$0xff]
    %v185 = vld [vmem:[#allocation5 + $0x320] sm:$0xff]
    %v186 = vld [vmem:[#allocation5 + $0x328] sm:$0xff]
    %v187 = vld [vmem:[#allocation5 + $0x330] sm:$0xff]
    %v188 = vld [vmem:[#allocation5 + $0x338] sm:$0xff]
    %v189 = vld [vmem:[#allocation5 + $0x340] sm:$0xff]
    %v190 = vld [vmem:[#allocation5 + $0x348] sm:$0xff]
    %v191 = vld [vmem:[#allocation5 + $0x350] sm:$0xff]
    %v192 = vld [vmem:[#allocation5 + $0x358] sm:$0xff]
    %v193 = vld [vmem:[#allocation5 + $0x360] sm:$0xff]
    %v194 = vld [vmem:[#allocation5 + $0x368] sm:$0xff]
    %v195 = vld [vmem:[#allocation5 + $0x370] sm:$0xff]
    %v196 = vld [vmem:[#allocation5 + $0x378] sm:$0xff]
    %v197 = vld [vmem:[#allocation5 + $0x380] sm:$0xff]
    %v198 = vld [vmem:[#allocation5 + $0x388] sm:$0xff]
    %v199 = vld [vmem:[#allocation5 + $0x390] sm:$0xff]
    %v200 = vld [vmem:[#allocation5 + $0x398] sm:$0xff]
    %v201 = vld [vmem:[#allocation5 + $0x3a0] sm:$0xff]
    %v202 = vld [vmem:[#allocation5 + $0x3a8] sm:$0xff]
    %v203 = vld [vmem:[#allocation5 + $0x3b0] sm:$0xff]
    %v204 = vld [vmem:[#allocation5 + $0x3b8] sm:$0xff]
    %v205 = vld [vmem:[#allocation5 + $0x3c0] sm:$0xff]
    %v206 = vld [vmem:[#allocation5 + $0x3c8] sm:$0xff]
    %v207 = vld [vmem:[#allocation5 + $0x3d0] sm:$0xff]
    %v208 = vld [vmem:[#allocation5 + $0x3d8] sm:$0xff]
    %v209 = vld [vmem:[#allocation5 + $0x3e0] sm:$0xff]
    %v210 = vld [vmem:[#allocation5 + $0x3e8] sm:$0xff]
    %v211 = vld [vmem:[#allocation5 + $0x3f0] sm:$0xff]
    %v212 = vld [vmem:[#allocation5 + $0x3f8] sm:$0xff]
    %v213 = vld [vmem:[#allocation5 + $0x400] sm:$0xff]
    %v214 = vld [vmem:[#allocation5 + $0x408] sm:$0xff]
    %v215 = vld [vmem:[#allocation5 + $0x410] sm:$0xff]
    %v216 = vld [vmem:[#allocation5 + $0x418] sm:$0xff]
    %v217 = vld [vmem:[#allocation5 + $0x420] sm:$0xff]
    %v218 = vld [vmem:[#allocation5 + $0x428] sm:$0xff]
    %v219 = vld [vmem:[#allocation5 + $0x430] sm:$0xff]
    %v220 = vld [vmem:[#allocation5 + $0x438] sm:$0xff]
    %v221 = vld [vmem:[#allocation5 + $0x440] sm:$0xff]
    %v222 = vld [vmem:[#allocation5 + $0x448] sm:$0xff]
    %v223 = vld [vmem:[#allocation5 + $0x450] sm:$0xff]
    %v224 = vld [vmem:[#allocation5 + $0x458] sm:$0xff]
    %v225 = vld [vmem:[#allocation5 + $0x460] sm:$0xff]
    %v226 = vld [vmem:[#allocation5 + $0x468] sm:$0xff]
    %v227 = vld [vmem:[#allocation5 + $0x470] sm:$0xff]
    %v228 = vld [vmem:[#allocation5 + $0x478] sm:$0xff]
    %v229 = vld [vmem:[#allocation5 + $0x480] sm:$0xff]
    %v230 = vld [vmem:[#allocation5 + $0x488] sm:$0xff]
    %v231 = vld [vmem:[#allocation5 + $0x490] sm:$0xff]
    %v232 = vld [vmem:[#allocation5 + $0x498] sm:$0xff]
    %v233 = vld [vmem:[#allocation5 + $0x4a0] sm:$0xff]
    %v234 = vld [vmem:[#allocation5 + $0x4a8] sm:$0xff]
    %v235 = vld [vmem:[#allocation5 + $0x4b0] sm:$0xff]
    %v236 = vld [vmem:[#allocation5 + $0x4b8] sm:$0xff]
    %v237 = vld [vmem:[#allocation5 + $0x4c0] sm:$0xff]
    %v238 = vld [vmem:[#allocation5 + $0x4c8] sm:$0xff]
    %v239 = vld [vmem:[#allocation5 + $0x4d0] sm:$0xff]
    %v240 = vld [vmem:[#allocation5 + $0x4d8] sm:$0xff]
    %v241 = vld [vmem:[#allocation5 + $0x4e0] sm:$0xff]
    %v242 = vld [vmem:[#allocation5 + $0x4e8] sm:$0xff]
    %v243 = vld [vmem:[#allocation5 + $0x4f0] sm:$0xff]
    %v244 = vld [vmem:[#allocation5 + $0x4f8] sm:$0xff]
    %v245 = vld [vmem:[#allocation5 + $0x500] sm:$0xff]
    %v246 = vld [vmem:[#allocation5 + $0x508] sm:$0xff]
    %v247 = vld [vmem:[#allocation5 + $0x510] sm:$0xff]
    %v248 = vld [vmem:[#allocation5 + $0x518] sm:$0xff]
    %v249 = vld [vmem:[#allocation5 + $0x520] sm:$0xff]
    %v250 = vld [vmem:[#allocation5 + $0x528] sm:$0xff]
    %v251 = vld [vmem:[#allocation5 + $0x530] sm:$0xff]
    %v252 = vld [vmem:[#allocation5 + $0x538] sm:$0xff]
    %v253 = vld [vmem:[#allocation5 + $0x540] sm:$0xff]
    %v254 = vld [vmem:[#allocation5 + $0x548] sm:$0xff]
    %v255 = vld [vmem:[#allocation5 + $0x550] sm:$0xff]
    %v256 = vld [vmem:[#allocation5 + $0x558] sm:$0xff]
    %v257 = vld [vmem:[#allocation5 + $0x560] sm:$0xff]
    %v258 = vld [vmem:[#allocation5 + $0x568] sm:$0xff]
    %v259 = vld [vmem:[#allocation5 + $0x570] sm:$0xff]
    %v260 = vld [vmem:[#allocation5 + $0x578] sm:$0xff]
    %v261 = vld [vmem:[#allocation5 + $0x580] sm:$0xff]
    %v262 = vld [vmem:[#allocation5 + $0x588] sm:$0xff]
    %v263 = vld [vmem:[#allocation5 + $0x590] sm:$0xff]
    %v264 = vld [vmem:[#allocation5 + $0x598] sm:$0xff]
    %v265 = vld [vmem:[#allocation5 + $0x5a0] sm:$0xff]
    %v266 = vld [vmem:[#allocation5 + $0x5a8] sm:$0xff]
    %v267 = vld [vmem:[#allocation5 + $0x5b0] sm:$0xff]
    %v268 = vld [vmem:[#allocation5 + $0x5b8] sm:$0xff]
    %v269 = vld [vmem:[#allocation5 + $0x5c0] sm:$0xff]
    %v270 = vld [vmem:[#allocation5 + $0x5c8] sm:$0xff]
    %v271 = vld [vmem:[#allocation5 + $0x5d0] sm:$0xff]
    %v272 = vld [vmem:[#allocation5 + $0x5d8] sm:$0xff]
    %v273 = vld [vmem:[#allocation5 + $0x5e0] sm:$0xff]
    %v274 = vld [vmem:[#allocation5 + $0x5e8] sm:$0xff]
    %v275 = vld [vmem:[#allocation5 + $0x5f0] sm:$0xff]
    %v276 = vld [vmem:[#allocation5 + $0x5f8] sm:$0xff]
    %v277 = vld [vmem:[#allocation5 + $0x600] sm:$0xff]
    %v278 = vld [vmem:[#allocation5 + $0x608] sm:$0xff]
    %v279 = vld [vmem:[#allocation5 + $0x610] sm:$0xff]
    %v280 = vld [vmem:[#allocation5 + $0x618] sm:$0xff]
    %v281 = vld [vmem:[#allocation5 + $0x620] sm:$0xff]
    %v282 = vld [vmem:[#allocation5 + $0x628] sm:$0xff]
    %v283 = vld [vmem:[#allocation5 + $0x630] sm:$0xff]
    %v284 = vld [vmem:[#allocation5 + $0x638] sm:$0xff]
    %v285 = vld [vmem:[#allocation5 + $0x640] sm:$0xff]
    %v286 = vld [vmem:[#allocation5 + $0x648] sm:$0xff]
    %v287 = vld [vmem:[#allocation5 + $0x650] sm:$0xff]
    %v288 = vld [vmem:[#allocation5 + $0x658] sm:$0xff]
    %v289 = vld [vmem:[#allocation5 + $0x660] sm:$0xff]
    %v290 = vld [vmem:[#allocation5 + $0x668] sm:$0xff]
    %v291 = vld [vmem:[#allocation5 + $0x670] sm:$0xff]
    %v292 = vld [vmem:[#allocation5 + $0x678] sm:$0xff]
    %v293 = vld [vmem:[#allocation5 + $0x680] sm:$0xff]
    %v294 = vld [vmem:[#allocation5 + $0x688] sm:$0xff]
    %v295 = vld [vmem:[#allocation5 + $0x690] sm:$0xff]
    %v296 = vld [vmem:[#allocation5 + $0x698] sm:$0xff]
    %v297 = vld [vmem:[#allocation5 + $0x6a0] sm:$0xff]
    %v298 = vld [vmem:[#allocation5 + $0x6a8] sm:$0xff]
    %v299 = vld [vmem:[#allocation5 + $0x6b0] sm:$0xff]
    %v300 = vld [vmem:[#allocation5 + $0x6b8] sm:$0xff]
    %v301 = vld [vmem:[#allocation5 + $0x6c0] sm:$0xff]
    %v302 = vld [vmem:[#allocation5 + $0x6c8] sm:$0xff]
    %v303 = vld [vmem:[#allocation5 + $0x6d0] sm:$0xff]
    %v304 = vld [vmem:[#allocation5 + $0x6d8] sm:$0xff]
    %v305 = vld [vmem:[#allocation5 + $0x6e0] sm:$0xff]
    %v306 = vld [vmem:[#allocation5 + $0x6e8] sm:$0xff]
    %v307 = vld [vmem:[#allocation5 + $0x6f0] sm:$0xff]
    %v308 = vld [vmem:[#allocation5 + $0x6f8] sm:$0xff]
    %v309 = vld [vmem:[%s4] sm:$0xf]
    %v311 = vlaneseq
    %v312 = vshrl.u32 %v311, 7
    %v313 = vsub.s32 0, %v312
    %v314 = vrot.slane %v309, %v313
    %v315 = vlaneseq
    %v316 = vshrl.u32 %v315, 7
    %v317 = vsub.s32 1, %v316
    %v318 = vrot.slane %v309, %v317
    %v319 = vlaneseq
    %v320 = vshrl.u32 %v319, 7
    %v321 = vsub.s32 2, %v320
    %v322 = vrot.slane %v309, %v321
    %v323 = vlaneseq
    %v324 = vshrl.u32 %v323, 7
    %v325 = vsub.s32 3, %v324
    %v326 = vrot.slane %v309, %v325
    %v339 = vunpack.c.l.b16 %v77
    %v340 = vunpack.c.h.b16 %v77
    %v341 = vunpack.c.l.b16 %v78
    %v342 = vunpack.c.h.b16 %v78
    %v343 = vunpack.c.l.b16 %v79
    %v344 = vunpack.c.h.b16 %v79
    %v345 = vunpack.c.l.b16 %v80
    %v346 = vunpack.c.l.b16 %v81
    %v347 = vunpack.c.h.b16 %v81
    %v348 = vunpack.c.l.b16 %v82
    %v349 = vunpack.c.h.b16 %v82
    %v350 = vunpack.c.l.b16 %v83
    %v351 = vunpack.c.h.b16 %v83
    %v352 = vunpack.c.l.b16 %v84
    %v353 = vpack.c.b16 %v346, %v339
    %v354 = vpack.c.b16 %v347, %v340
    %v355 = vpack.c.b16 %v348, %v341
    %v356 = vpack.c.b16 %v349, %v342
    %v357 = vpack.c.b16 %v350, %v343
    %v358 = vpack.c.b16 %v351, %v344
    %v359 = vpack.c.b16 %v352, %v345
    %v591 = vunpack.c.l.b16 %v85
    %v592 = vunpack.c.h.b16 %v85
    %v593 = vunpack.c.l.b16 %v86
    %v594 = vunpack.c.h.b16 %v86
    %v595 = vunpack.c.l.b16 %v87
    %v596 = vunpack.c.h.b16 %v87
    %v597 = vunpack.c.l.b16 %v88
    %v598 = vunpack.c.h.b16 %v88
    %v599 = vunpack.c.l.b16 %v89
    %v600 = vunpack.c.h.b16 %v89
    %v601 = vunpack.c.l.b16 %v90
    %v602 = vunpack.c.h.b16 %v90
    %v603 = vunpack.c.l.b16 %v91
    %v604 = vunpack.c.h.b16 %v91
    %v605 = vunpack.c.l.b16 %v92
    %v606 = vunpack.c.h.b16 %v92
    %v607 = vunpack.c.l.b16 %v93
    %v608 = vunpack.c.h.b16 %v93
    %v609 = vunpack.c.l.b16 %v94
    %v610 = vunpack.c.h.b16 %v94
    %v611 = vunpack.c.l.b16 %v95
    %v612 = vunpack.c.h.b16 %v95
    %v613 = vunpack.c.l.b16 %v96
    %v614 = vunpack.c.h.b16 %v96
    %v615 = vunpack.c.l.b16 %v97
    %v616 = vunpack.c.h.b16 %v97
    %v617 = vunpack.c.l.b16 %v98
    %v618 = vunpack.c.h.b16 %v98
    %v619 = vunpack.c.l.b16 %v99
    %v620 = vunpack.c.h.b16 %v99
    %v621 = vunpack.c.l.b16 %v100
    %v622 = vunpack.c.h.b16 %v100
    %v623 = vunpack.c.l.b16 %v101
    %v624 = vunpack.c.h.b16 %v101
    %v625 = vunpack.c.l.b16 %v102
    %v626 = vunpack.c.h.b16 %v102
    %v627 = vunpack.c.l.b16 %v103
    %v628 = vunpack.c.h.b16 %v103
    %v629 = vunpack.c.l.b16 %v104
    %v630 = vunpack.c.h.b16 %v104
    %v631 = vunpack.c.l.b16 %v105
    %v632 = vunpack.c.h.b16 %v105
    %v633 = vunpack.c.l.b16 %v106
    %v634 = vunpack.c.h.b16 %v106
    %v635 = vunpack.c.l.b16 %v107
    %v636 = vunpack.c.h.b16 %v107
    %v637 = vunpack.c.l.b16 %v108
    %v638 = vunpack.c.h.b16 %v108
    %v639 = vunpack.c.l.b16 %v109
    %v640 = vunpack.c.h.b16 %v109
    %v641 = vunpack.c.l.b16 %v110
    %v642 = vunpack.c.h.b16 %v110
    %v643 = vunpack.c.l.b16 %v111
    %v644 = vunpack.c.h.b16 %v111
    %v645 = vunpack.c.l.b16 %v112
    %v646 = vunpack.c.h.b16 %v112
    %v647 = vunpack.c.l.b16 %v113
    %v648 = vunpack.c.h.b16 %v113
    %v649 = vunpack.c.l.b16 %v114
    %v650 = vunpack.c.h.b16 %v114
    %v651 = vunpack.c.l.b16 %v115
    %v652 = vunpack.c.h.b16 %v115
    %v653 = vunpack.c.l.b16 %v116
    %v654 = vunpack.c.h.b16 %v116
    %v655 = vunpack.c.l.b16 %v117
    %v656 = vunpack.c.h.b16 %v117
    %v657 = vunpack.c.l.b16 %v118
    %v658 = vunpack.c.h.b16 %v118
    %v659 = vunpack.c.l.b16 %v119
    %v660 = vunpack.c.h.b16 %v119
    %v661 = vunpack.c.l.b16 %v120
    %v662 = vunpack.c.h.b16 %v120
    %v663 = vunpack.c.l.b16 %v121
    %v664 = vunpack.c.h.b16 %v121
    %v665 = vunpack.c.l.b16 %v122
    %v666 = vunpack.c.h.b16 %v122
    %v667 = vunpack.c.l.b16 %v123
    %v668 = vunpack.c.h.b16 %v123
    %v669 = vunpack.c.l.b16 %v124
    %v670 = vunpack.c.h.b16 %v124
    %v671 = vunpack.c.l.b16 %v125
    %v672 = vunpack.c.h.b16 %v125
    %v673 = vunpack.c.l.b16 %v126
    %v674 = vunpack.c.h.b16 %v126
    %v675 = vunpack.c.l.b16 %v127
    %v676 = vunpack.c.h.b16 %v127
    %v677 = vunpack.c.l.b16 %v128
    %v678 = vunpack.c.h.b16 %v128
    %v679 = vunpack.c.l.b16 %v129
    %v680 = vunpack.c.h.b16 %v129
    %v681 = vunpack.c.l.b16 %v130
    %v682 = vunpack.c.h.b16 %v130
    %v683 = vunpack.c.l.b16 %v131
    %v684 = vunpack.c.h.b16 %v131
    %v685 = vunpack.c.l.b16 %v132
    %v686 = vunpack.c.h.b16 %v132
    %v687 = vunpack.c.l.b16 %v133
    %v688 = vunpack.c.h.b16 %v133
    %v689 = vunpack.c.l.b16 %v134
    %v690 = vunpack.c.h.b16 %v134
    %v691 = vunpack.c.l.b16 %v135
    %v692 = vunpack.c.h.b16 %v135
    %v693 = vunpack.c.l.b16 %v136
    %v694 = vunpack.c.h.b16 %v136
    %v695 = vunpack.c.l.b16 %v137
    %v696 = vunpack.c.h.b16 %v137
    %v697 = vunpack.c.l.b16 %v138
    %v698 = vunpack.c.h.b16 %v138
    %v699 = vunpack.c.l.b16 %v139
    %v700 = vunpack.c.h.b16 %v139
    %v701 = vunpack.c.l.b16 %v140
    %v702 = vunpack.c.h.b16 %v140
    %v703 = vunpack.c.l.b16 %v141
    %v704 = vunpack.c.h.b16 %v141
    %v705 = vunpack.c.l.b16 %v142
    %v706 = vunpack.c.h.b16 %v142
    %v707 = vunpack.c.l.b16 %v143
    %v708 = vunpack.c.h.b16 %v143
    %v709 = vunpack.c.l.b16 %v144
    %v710 = vunpack.c.h.b16 %v144
    %v711 = vunpack.c.l.b16 %v145
    %v712 = vunpack.c.h.b16 %v145
    %v713 = vunpack.c.l.b16 %v146
    %v714 = vunpack.c.h.b16 %v146
    %v715 = vunpack.c.l.b16 %v147
    %v716 = vunpack.c.h.b16 %v147
    %v717 = vunpack.c.l.b16 %v148
    %v718 = vunpack.c.h.b16 %v148
    %v719 = vunpack.c.l.b16 %v149
    %v720 = vunpack.c.h.b16 %v149
    %v721 = vunpack.c.l.b16 %v150
    %v722 = vunpack.c.h.b16 %v150
    %v723 = vunpack.c.l.b16 %v151
    %v724 = vunpack.c.h.b16 %v151
    %v725 = vunpack.c.l.b16 %v152
    %v726 = vunpack.c.h.b16 %v152
    %v727 = vunpack.c.l.b16 %v153
    %v728 = vunpack.c.h.b16 %v153
    %v729 = vunpack.c.l.b16 %v154
    %v730 = vunpack.c.h.b16 %v154
    %v731 = vunpack.c.l.b16 %v155
    %v732 = vunpack.c.h.b16 %v155
    %v733 = vunpack.c.l.b16 %v156
    %v734 = vunpack.c.h.b16 %v156
    %v735 = vunpack.c.l.b16 %v157
    %v736 = vunpack.c.h.b16 %v157
    %v737 = vunpack.c.l.b16 %v158
    %v738 = vunpack.c.h.b16 %v158
    %v739 = vunpack.c.l.b16 %v159
    %v740 = vunpack.c.h.b16 %v159
    %v741 = vunpack.c.l.b16 %v160
    %v742 = vunpack.c.h.b16 %v160
    %v743 = vunpack.c.l.b16 %v161
    %v744 = vunpack.c.h.b16 %v161
    %v745 = vunpack.c.l.b16 %v162
    %v746 = vunpack.c.h.b16 %v162
    %v747 = vunpack.c.l.b16 %v163
    %v748 = vunpack.c.h.b16 %v163
    %v749 = vunpack.c.l.b16 %v164
    %v750 = vunpack.c.h.b16 %v164
    %v751 = vunpack.c.l.b16 %v165
    %v752 = vunpack.c.h.b16 %v165
    %v753 = vunpack.c.l.b16 %v166
    %v754 = vunpack.c.h.b16 %v166
    %v755 = vunpack.c.l.b16 %v167
    %v756 = vunpack.c.h.b16 %v167
    %v757 = vunpack.c.l.b16 %v168
    %v758 = vunpack.c.h.b16 %v168
    %v759 = vunpack.c.l.b16 %v169
    %v760 = vunpack.c.h.b16 %v169
    %v761 = vunpack.c.l.b16 %v170
    %v762 = vunpack.c.h.b16 %v170
    %v763 = vunpack.c.l.b16 %v171
    %v764 = vunpack.c.h.b16 %v171
    %v765 = vunpack.c.l.b16 %v172
    %v766 = vunpack.c.h.b16 %v172
    %v767 = vunpack.c.l.b16 %v173
    %v768 = vunpack.c.h.b16 %v173
    %v769 = vunpack.c.l.b16 %v174
    %v770 = vunpack.c.h.b16 %v174
    %v771 = vunpack.c.l.b16 %v175
    %v772 = vunpack.c.h.b16 %v175
    %v773 = vunpack.c.l.b16 %v176
    %v774 = vunpack.c.h.b16 %v176
    %v775 = vunpack.c.l.b16 %v177
    %v776 = vunpack.c.h.b16 %v177
    %v777 = vunpack.c.l.b16 %v178
    %v778 = vunpack.c.h.b16 %v178
    %v779 = vunpack.c.l.b16 %v179
    %v780 = vunpack.c.h.b16 %v179
    %v781 = vunpack.c.l.b16 %v180
    %v782 = vunpack.c.h.b16 %v180
    %v783 = vunpack.c.l.b16 %v181
    %v784 = vunpack.c.h.b16 %v181
    %v785 = vunpack.c.l.b16 %v182
    %v786 = vunpack.c.h.b16 %v182
    %v787 = vunpack.c.l.b16 %v183
    %v788 = vunpack.c.h.b16 %v183
    %v789 = vunpack.c.l.b16 %v184
    %v790 = vunpack.c.h.b16 %v184
    %v791 = vunpack.c.l.b16 %v185
    %v792 = vunpack.c.h.b16 %v185
    %v793 = vunpack.c.l.b16 %v186
    %v794 = vunpack.c.h.b16 %v186
    %v795 = vunpack.c.l.b16 %v187
    %v796 = vunpack.c.h.b16 %v187
    %v797 = vunpack.c.l.b16 %v188
    %v798 = vunpack.c.h.b16 %v188
    %v799 = vunpack.c.l.b16 %v189
    %v800 = vunpack.c.h.b16 %v189
    %v801 = vunpack.c.l.b16 %v190
    %v802 = vunpack.c.h.b16 %v190
    %v803 = vunpack.c.l.b16 %v191
    %v804 = vunpack.c.h.b16 %v191
    %v805 = vunpack.c.l.b16 %v192
    %v806 = vunpack.c.h.b16 %v192
    %v807 = vunpack.c.l.b16 %v193
    %v808 = vunpack.c.h.b16 %v193
    %v809 = vunpack.c.l.b16 %v194
    %v810 = vunpack.c.h.b16 %v194
    %v811 = vunpack.c.l.b16 %v195
    %v812 = vunpack.c.h.b16 %v195
    %v813 = vunpack.c.l.b16 %v196
    %v814 = vunpack.c.h.b16 %v196
    %v815 = vunpack.c.l.b16 %v197
    %v816 = vunpack.c.h.b16 %v197
    %v817 = vunpack.c.l.b16 %v198
    %v818 = vunpack.c.h.b16 %v198
    %v819 = vunpack.c.l.b16 %v199
    %v820 = vunpack.c.h.b16 %v199
    %v821 = vunpack.c.l.b16 %v200
    %v822 = vunpack.c.h.b16 %v200
    %v823 = vunpack.c.l.b16 %v201
    %v824 = vunpack.c.h.b16 %v201
    %v825 = vunpack.c.l.b16 %v202
    %v826 = vunpack.c.h.b16 %v202
    %v827 = vunpack.c.l.b16 %v203
    %v828 = vunpack.c.h.b16 %v203
    %v829 = vunpack.c.l.b16 %v204
    %v830 = vunpack.c.h.b16 %v204
    %v831 = vunpack.c.l.b16 %v205
    %v832 = vunpack.c.h.b16 %v205
    %v833 = vunpack.c.l.b16 %v206
    %v834 = vunpack.c.h.b16 %v206
    %v835 = vunpack.c.l.b16 %v207
    %v836 = vunpack.c.h.b16 %v207
    %v837 = vunpack.c.l.b16 %v208
    %v838 = vunpack.c.h.b16 %v208
    %v839 = vunpack.c.l.b16 %v209
    %v840 = vunpack.c.h.b16 %v209
    %v841 = vunpack.c.l.b16 %v210
    %v842 = vunpack.c.h.b16 %v210
    %v843 = vunpack.c.l.b16 %v211
    %v844 = vunpack.c.h.b16 %v211
    %v845 = vunpack.c.l.b16 %v212
    %v846 = vunpack.c.h.b16 %v212
    %v847 = vunpack.c.l.b16 %v213
    %v848 = vunpack.c.h.b16 %v213
    %v849 = vunpack.c.l.b16 %v214
    %v850 = vunpack.c.h.b16 %v214
    %v851 = vunpack.c.l.b16 %v215
    %v852 = vunpack.c.h.b16 %v215
    %v853 = vunpack.c.l.b16 %v216
    %v854 = vunpack.c.h.b16 %v216
    %v855 = vunpack.c.l.b16 %v217
    %v856 = vunpack.c.h.b16 %v217
    %v857 = vunpack.c.l.b16 %v218
    %v858 = vunpack.c.h.b16 %v218
    %v859 = vunpack.c.l.b16 %v219
    %v860 = vunpack.c.h.b16 %v219
    %v861 = vunpack.c.l.b16 %v220
    %v862 = vunpack.c.h.b16 %v220
    %v863 = vunpack.c.l.b16 %v221
    %v864 = vunpack.c.h.b16 %v221
    %v865 = vunpack.c.l.b16 %v222
    %v866 = vunpack.c.h.b16 %v222
    %v867 = vunpack.c.l.b16 %v223
    %v868 = vunpack.c.h.b16 %v223
    %v869 = vunpack.c.l.b16 %v224
    %v870 = vunpack.c.h.b16 %v224
    %v871 = vunpack.c.l.b16 %v225
    %v872 = vunpack.c.h.b16 %v225
    %v873 = vunpack.c.l.b16 %v226
    %v874 = vunpack.c.h.b16 %v226
    %v875 = vunpack.c.l.b16 %v227
    %v876 = vunpack.c.h.b16 %v227
    %v877 = vunpack.c.l.b16 %v228
    %v878 = vunpack.c.h.b16 %v228
    %v879 = vunpack.c.l.b16 %v229
    %v880 = vunpack.c.h.b16 %v229
    %v881 = vunpack.c.l.b16 %v230
    %v882 = vunpack.c.h.b16 %v230
    %v883 = vunpack.c.l.b16 %v231
    %v884 = vunpack.c.h.b16 %v231
    %v885 = vunpack.c.l.b16 %v232
    %v886 = vunpack.c.h.b16 %v232
    %v887 = vunpack.c.l.b16 %v233
    %v888 = vunpack.c.h.b16 %v233
    %v889 = vunpack.c.l.b16 %v234
    %v890 = vunpack.c.h.b16 %v234
    %v891 = vunpack.c.l.b16 %v235
    %v892 = vunpack.c.h.b16 %v235
    %v893 = vunpack.c.l.b16 %v236
    %v894 = vunpack.c.h.b16 %v236
    %v895 = vunpack.c.l.b16 %v237
    %v896 = vunpack.c.h.b16 %v237
    %v897 = vunpack.c.l.b16 %v238
    %v898 = vunpack.c.h.b16 %v238
    %v899 = vunpack.c.l.b16 %v239
    %v900 = vunpack.c.h.b16 %v239
    %v901 = vunpack.c.l.b16 %v240
    %v902 = vunpack.c.h.b16 %v240
    %v903 = vunpack.c.l.b16 %v241
    %v904 = vunpack.c.h.b16 %v241
    %v905 = vunpack.c.l.b16 %v242
    %v906 = vunpack.c.h.b16 %v242
    %v907 = vunpack.c.l.b16 %v243
    %v908 = vunpack.c.h.b16 %v243
    %v909 = vunpack.c.l.b16 %v244
    %v910 = vunpack.c.h.b16 %v244
    %v911 = vunpack.c.l.b16 %v245
    %v912 = vunpack.c.h.b16 %v245
    %v913 = vunpack.c.l.b16 %v246
    %v914 = vunpack.c.h.b16 %v246
    %v915 = vunpack.c.l.b16 %v247
    %v916 = vunpack.c.h.b16 %v247
    %v917 = vunpack.c.l.b16 %v248
    %v918 = vunpack.c.h.b16 %v248
    %v919 = vunpack.c.l.b16 %v249
    %v920 = vunpack.c.h.b16 %v249
    %v921 = vunpack.c.l.b16 %v250
    %v922 = vunpack.c.h.b16 %v250
    %v923 = vunpack.c.l.b16 %v251
    %v924 = vunpack.c.h.b16 %v251
    %v925 = vunpack.c.l.b16 %v252
    %v926 = vunpack.c.h.b16 %v252
    %v927 = vunpack.c.l.b16 %v253
    %v928 = vunpack.c.h.b16 %v253
    %v929 = vunpack.c.l.b16 %v254
    %v930 = vunpack.c.h.b16 %v254
    %v931 = vunpack.c.l.b16 %v255
    %v932 = vunpack.c.h.b16 %v255
    %v933 = vunpack.c.l.b16 %v256
    %v934 = vunpack.c.h.b16 %v256
    %v935 = vunpack.c.l.b16 %v257
    %v936 = vunpack.c.h.b16 %v257
    %v937 = vunpack.c.l.b16 %v258
    %v938 = vunpack.c.h.b16 %v258
    %v939 = vunpack.c.l.b16 %v259
    %v940 = vunpack.c.h.b16 %v259
    %v941 = vunpack.c.l.b16 %v260
    %v942 = vunpack.c.h.b16 %v260
    %v943 = vunpack.c.l.b16 %v261
    %v944 = vunpack.c.h.b16 %v261
    %v945 = vunpack.c.l.b16 %v262
    %v946 = vunpack.c.h.b16 %v262
    %v947 = vunpack.c.l.b16 %v263
    %v948 = vunpack.c.h.b16 %v263
    %v949 = vunpack.c.l.b16 %v264
    %v950 = vunpack.c.h.b16 %v264
    %v951 = vunpack.c.l.b16 %v265
    %v952 = vunpack.c.h.b16 %v265
    %v953 = vunpack.c.l.b16 %v266
    %v954 = vunpack.c.h.b16 %v266
    %v955 = vunpack.c.l.b16 %v267
    %v956 = vunpack.c.h.b16 %v267
    %v957 = vunpack.c.l.b16 %v268
    %v958 = vunpack.c.h.b16 %v268
    %v959 = vunpack.c.l.b16 %v269
    %v960 = vunpack.c.h.b16 %v269
    %v961 = vunpack.c.l.b16 %v270
    %v962 = vunpack.c.h.b16 %v270
    %v963 = vunpack.c.l.b16 %v271
    %v964 = vunpack.c.h.b16 %v271
    %v965 = vunpack.c.l.b16 %v272
    %v966 = vunpack.c.h.b16 %v272
    %v967 = vunpack.c.l.b16 %v273
    %v968 = vunpack.c.h.b16 %v273
    %v969 = vunpack.c.l.b16 %v274
    %v970 = vunpack.c.h.b16 %v274
    %v971 = vunpack.c.l.b16 %v275
    %v972 = vunpack.c.h.b16 %v275
    %v973 = vunpack.c.l.b16 %v276
    %v974 = vunpack.c.h.b16 %v276
    %v975 = vunpack.c.l.b16 %v277
    %v976 = vunpack.c.h.b16 %v277
    %v977 = vunpack.c.l.b16 %v278
    %v978 = vunpack.c.h.b16 %v278
    %v979 = vunpack.c.l.b16 %v279
    %v980 = vunpack.c.h.b16 %v279
    %v981 = vunpack.c.l.b16 %v280
    %v982 = vunpack.c.h.b16 %v280
    %v983 = vunpack.c.l.b16 %v281
    %v984 = vunpack.c.h.b16 %v281
    %v985 = vunpack.c.l.b16 %v282
    %v986 = vunpack.c.h.b16 %v282
    %v987 = vunpack.c.l.b16 %v283
    %v988 = vunpack.c.h.b16 %v283
    %v989 = vunpack.c.l.b16 %v284
    %v990 = vunpack.c.h.b16 %v284
    %v991 = vunpack.c.l.b16 %v285
    %v992 = vunpack.c.h.b16 %v285
    %v993 = vunpack.c.l.b16 %v286
    %v994 = vunpack.c.h.b16 %v286
    %v995 = vunpack.c.l.b16 %v287
    %v996 = vunpack.c.h.b16 %v287
    %v997 = vunpack.c.l.b16 %v288
    %v998 = vunpack.c.h.b16 %v288
    %v999 = vunpack.c.l.b16 %v289
    %v1000 = vunpack.c.h.b16 %v289
    %v1001 = vunpack.c.l.b16 %v290
    %v1002 = vunpack.c.h.b16 %v290
    %v1003 = vunpack.c.l.b16 %v291
    %v1004 = vunpack.c.h.b16 %v291
    %v1005 = vunpack.c.l.b16 %v292
    %v1006 = vunpack.c.h.b16 %v292
    %v1007 = vunpack.c.l.b16 %v293
    %v1008 = vunpack.c.h.b16 %v293
    %v1009 = vunpack.c.l.b16 %v294
    %v1010 = vunpack.c.h.b16 %v294
    %v1011 = vunpack.c.l.b16 %v295
    %v1012 = vunpack.c.h.b16 %v295
    %v1013 = vunpack.c.l.b16 %v296
    %v1014 = vunpack.c.h.b16 %v296
    %v1015 = vunpack.c.l.b16 %v297
    %v1016 = vunpack.c.h.b16 %v297
    %v1017 = vunpack.c.l.b16 %v298
    %v1018 = vunpack.c.h.b16 %v298
    %v1019 = vunpack.c.l.b16 %v299
    %v1020 = vunpack.c.h.b16 %v299
    %v1021 = vunpack.c.l.b16 %v300
    %v1022 = vunpack.c.h.b16 %v300
    %v1023 = vunpack.c.l.b16 %v301
    %v1024 = vunpack.c.h.b16 %v301
    %v1025 = vunpack.c.l.b16 %v302
    %v1026 = vunpack.c.h.b16 %v302
    %v1027 = vunpack.c.l.b16 %v303
    %v1028 = vunpack.c.h.b16 %v303
    %v1029 = vunpack.c.l.b16 %v304
    %v1030 = vunpack.c.h.b16 %v304
    %v1031 = vunpack.c.l.b16 %v305
    %v1032 = vunpack.c.h.b16 %v305
    %v1033 = vunpack.c.l.b16 %v306
    %v1034 = vunpack.c.h.b16 %v306
    %v1035 = vunpack.c.l.b16 %v307
    %v1036 = vunpack.c.h.b16 %v307
    %v1037 = vunpack.c.l.b16 %v308
    %v1038 = vunpack.c.h.b16 %v308
    %v1039 = vpack.c.b16 %v595, %v591
    %v1040 = vpack.c.b16 %v596, %v592
    %v1041 = vpack.c.b16 %v597, %v593
    %v1042 = vpack.c.b16 %v598, %v594
    %v1043 = vpack.c.b16 %v603, %v599
    %v1044 = vpack.c.b16 %v604, %v600
    %v1045 = vpack.c.b16 %v605, %v601
    %v1046 = vpack.c.b16 %v606, %v602
    %v1047 = vpack.c.b16 %v611, %v607
    %v1048 = vpack.c.b16 %v612, %v608
    %v1049 = vpack.c.b16 %v613, %v609
    %v1050 = vpack.c.b16 %v614, %v610
    %v1051 = vpack.c.b16 %v619, %v615
    %v1052 = vpack.c.b16 %v620, %v616
    %v1053 = vpack.c.b16 %v621, %v617
    %v1054 = vpack.c.b16 %v622, %v618
    %v1055 = vpack.c.b16 %v627, %v623
    %v1056 = vpack.c.b16 %v628, %v624
    %v1057 = vpack.c.b16 %v629, %v625
    %v1058 = vpack.c.b16 %v630, %v626
    %v1059 = vpack.c.b16 %v635, %v631
    %v1060 = vpack.c.b16 %v636, %v632
    %v1061 = vpack.c.b16 %v637, %v633
    %v1062 = vpack.c.b16 %v638, %v634
    %v1063 = vpack.c.b16 %v643, %v639
    %v1064 = vpack.c.b16 %v644, %v640
    %v1065 = vpack.c.b16 %v645, %v641
    %v1066 = vpack.c.b16 %v646, %v642
    %v1067 = vpack.c.b16 %v651, %v647
    %v1068 = vpack.c.b16 %v652, %v648
    %v1069 = vpack.c.b16 %v653, %v649
    %v1070 = vpack.c.b16 %v654, %v650
    %v1071 = vpack.c.b16 %v659, %v655
    %v1072 = vpack.c.b16 %v660, %v656
    %v1073 = vpack.c.b16 %v661, %v657
    %v1074 = vpack.c.b16 %v662, %v658
    %v1075 = vpack.c.b16 %v667, %v663
    %v1076 = vpack.c.b16 %v668, %v664
    %v1077 = vpack.c.b16 %v669, %v665
    %v1078 = vpack.c.b16 %v670, %v666
    %v1079 = vpack.c.b16 %v675, %v671
    %v1080 = vpack.c.b16 %v676, %v672
    %v1081 = vpack.c.b16 %v677, %v673
    %v1082 = vpack.c.b16 %v678, %v674
    %v1083 = vpack.c.b16 %v683, %v679
    %v1084 = vpack.c.b16 %v684, %v680
    %v1085 = vpack.c.b16 %v685, %v681
    %v1086 = vpack.c.b16 %v686, %v682
    %v1087 = vpack.c.b16 %v691, %v687
    %v1088 = vpack.c.b16 %v692, %v688
    %v1089 = vpack.c.b16 %v693, %v689
    %v1090 = vpack.c.b16 %v694, %v690
    %v1091 = vpack.c.b16 %v699, %v695
    %v1092 = vpack.c.b16 %v700, %v696
    %v1093 = vpack.c.b16 %v701, %v697
    %v1094 = vpack.c.b16 %v702, %v698
    %v1095 = vpack.c.b16 %v707, %v703
    %v1096 = vpack.c.b16 %v708, %v704
    %v1097 = vpack.c.b16 %v709, %v705
    %v1098 = vpack.c.b16 %v710, %v706
    %v1099 = vpack.c.b16 %v715, %v711
    %v1100 = vpack.c.b16 %v716, %v712
    %v1101 = vpack.c.b16 %v717, %v713
    %v1102 = vpack.c.b16 %v718, %v714
    %v1103 = vpack.c.b16 %v723, %v719
    %v1104 = vpack.c.b16 %v724, %v720
    %v1105 = vpack.c.b16 %v725, %v721
    %v1106 = vpack.c.b16 %v726, %v722
    %v1107 = vpack.c.b16 %v731, %v727
    %v1108 = vpack.c.b16 %v732, %v728
    %v1109 = vpack.c.b16 %v733, %v729
    %v1110 = vpack.c.b16 %v734, %v730
    %v1111 = vpack.c.b16 %v739, %v735
    %v1112 = vpack.c.b16 %v740, %v736
    %v1113 = vpack.c.b16 %v741, %v737
    %v1114 = vpack.c.b16 %v742, %v738
    %v1115 = vpack.c.b16 %v747, %v743
    %v1116 = vpack.c.b16 %v748, %v744
    %v1117 = vpack.c.b16 %v749, %v745
    %v1118 = vpack.c.b16 %v750, %v746
    %v1119 = vpack.c.b16 %v755, %v751
    %v1120 = vpack.c.b16 %v756, %v752
    %v1121 = vpack.c.b16 %v757, %v753
    %v1122 = vpack.c.b16 %v758, %v754
    %v1123 = vpack.c.b16 %v763, %v759
    %v1124 = vpack.c.b16 %v764, %v760
    %v1125 = vpack.c.b16 %v765, %v761
    %v1126 = vpack.c.b16 %v766, %v762
    %v1127 = vpack.c.b16 %v771, %v767
    %v1128 = vpack.c.b16 %v772, %v768
    %v1129 = vpack.c.b16 %v773, %v769
    %v1130 = vpack.c.b16 %v774, %v770
    %v1131 = vpack.c.b16 %v779, %v775
    %v1132 = vpack.c.b16 %v780, %v776
    %v1133 = vpack.c.b16 %v781, %v777
    %v1134 = vpack.c.b16 %v782, %v778
    %v1135 = vpack.c.b16 %v787, %v783
    %v1136 = vpack.c.b16 %v788, %v784
    %v1137 = vpack.c.b16 %v789, %v785
    %v1138 = vpack.c.b16 %v790, %v786
    %v1139 = vpack.c.b16 %v795, %v791
    %v1140 = vpack.c.b16 %v796, %v792
    %v1141 = vpack.c.b16 %v797, %v793
    %v1142 = vpack.c.b16 %v798, %v794
    %v1143 = vpack.c.b16 %v803, %v799
    %v1144 = vpack.c.b16 %v804, %v800
    %v1145 = vpack.c.b16 %v805, %v801
    %v1146 = vpack.c.b16 %v806, %v802
    %v1147 = vpack.c.b16 %v811, %v807
    %v1148 = vpack.c.b16 %v812, %v808
    %v1149 = vpack.c.b16 %v813, %v809
    %v1150 = vpack.c.b16 %v814, %v810
    %v1151 = vpack.c.b16 %v819, %v815
    %v1152 = vpack.c.b16 %v820, %v816
    %v1153 = vpack.c.b16 %v821, %v817
    %v1154 = vpack.c.b16 %v822, %v818
    %v1155 = vpack.c.b16 %v827, %v823
    %v1156 = vpack.c.b16 %v828, %v824
    %v1157 = vpack.c.b16 %v829, %v825
    %v1158 = vpack.c.b16 %v830, %v826
    %v1159 = vpack.c.b16 %v835, %v831
    %v1160 = vpack.c.b16 %v836, %v832
    %v1161 = vpack.c.b16 %v837, %v833
    %v1162 = vpack.c.b16 %v838, %v834
    %v1163 = vpack.c.b16 %v843, %v839
    %v1164 = vpack.c.b16 %v844, %v840
    %v1165 = vpack.c.b16 %v845, %v841
    %v1166 = vpack.c.b16 %v846, %v842
    %v1167 = vpack.c.b16 %v851, %v847
    %v1168 = vpack.c.b16 %v852, %v848
    %v1169 = vpack.c.b16 %v853, %v849
    %v1170 = vpack.c.b16 %v854, %v850
    %v1171 = vpack.c.b16 %v859, %v855
    %v1172 = vpack.c.b16 %v860, %v856
    %v1173 = vpack.c.b16 %v861, %v857
    %v1174 = vpack.c.b16 %v862, %v858
    %v1175 = vpack.c.b16 %v867, %v863
    %v1176 = vpack.c.b16 %v868, %v864
    %v1177 = vpack.c.b16 %v869, %v865
    %v1178 = vpack.c.b16 %v870, %v866
    %v1179 = vpack.c.b16 %v875, %v871
    %v1180 = vpack.c.b16 %v876, %v872
    %v1181 = vpack.c.b16 %v877, %v873
    %v1182 = vpack.c.b16 %v878, %v874
    %v1183 = vpack.c.b16 %v883, %v879
    %v1184 = vpack.c.b16 %v884, %v880
    %v1185 = vpack.c.b16 %v885, %v881
    %v1186 = vpack.c.b16 %v886, %v882
    %v1187 = vpack.c.b16 %v891, %v887
    %v1188 = vpack.c.b16 %v892, %v888
    %v1189 = vpack.c.b16 %v893, %v889
    %v1190 = vpack.c.b16 %v894, %v890
    %v1191 = vpack.c.b16 %v899, %v895
    %v1192 = vpack.c.b16 %v900, %v896
    %v1193 = vpack.c.b16 %v901, %v897
    %v1194 = vpack.c.b16 %v902, %v898
    %v1195 = vpack.c.b16 %v907, %v903
    %v1196 = vpack.c.b16 %v908, %v904
    %v1197 = vpack.c.b16 %v909, %v905
    %v1198 = vpack.c.b16 %v910, %v906
    %v1199 = vpack.c.b16 %v915, %v911
    %v1200 = vpack.c.b16 %v916, %v912
    %v1201 = vpack.c.b16 %v917, %v913
    %v1202 = vpack.c.b16 %v918, %v914
    %v1203 = vpack.c.b16 %v923, %v919
    %v1204 = vpack.c.b16 %v924, %v920
    %v1205 = vpack.c.b16 %v925, %v921
    %v1206 = vpack.c.b16 %v926, %v922
    %v1207 = vpack.c.b16 %v931, %v927
    %v1208 = vpack.c.b16 %v932, %v928
    %v1209 = vpack.c.b16 %v933, %v929
    %v1210 = vpack.c.b16 %v934, %v930
    %v1211 = vpack.c.b16 %v939, %v935
    %v1212 = vpack.c.b16 %v940, %v936
    %v1213 = vpack.c.b16 %v941, %v937
    %v1214 = vpack.c.b16 %v942, %v938
    %v1215 = vpack.c.b16 %v947, %v943
    %v1216 = vpack.c.b16 %v948, %v944
    %v1217 = vpack.c.b16 %v949, %v945
    %v1218 = vpack.c.b16 %v950, %v946
    %v1219 = vpack.c.b16 %v955, %v951
    %v1220 = vpack.c.b16 %v956, %v952
    %v1221 = vpack.c.b16 %v957, %v953
    %v1222 = vpack.c.b16 %v958, %v954
    %v1223 = vpack.c.b16 %v963, %v959
    %v1224 = vpack.c.b16 %v964, %v960
    %v1225 = vpack.c.b16 %v965, %v961
    %v1226 = vpack.c.b16 %v966, %v962
    %v1227 = vpack.c.b16 %v971, %v967
    %v1228 = vpack.c.b16 %v972, %v968
    %v1229 = vpack.c.b16 %v973, %v969
    %v1230 = vpack.c.b16 %v974, %v970
    %v1231 = vpack.c.b16 %v979, %v975
    %v1232 = vpack.c.b16 %v980, %v976
    %v1233 = vpack.c.b16 %v981, %v977
    %v1234 = vpack.c.b16 %v982, %v978
    %v1235 = vpack.c.b16 %v987, %v983
    %v1236 = vpack.c.b16 %v988, %v984
    %v1237 = vpack.c.b16 %v989, %v985
    %v1238 = vpack.c.b16 %v990, %v986
    %v1239 = vpack.c.b16 %v995, %v991
    %v1240 = vpack.c.b16 %v996, %v992
    %v1241 = vpack.c.b16 %v997, %v993
    %v1242 = vpack.c.b16 %v998, %v994
    %v1243 = vpack.c.b16 %v1003, %v999
    %v1244 = vpack.c.b16 %v1004, %v1000
    %v1245 = vpack.c.b16 %v1005, %v1001
    %v1246 = vpack.c.b16 %v1006, %v1002
    %v1247 = vpack.c.b16 %v1011, %v1007
    %v1248 = vpack.c.b16 %v1012, %v1008
    %v1249 = vpack.c.b16 %v1013, %v1009
    %v1250 = vpack.c.b16 %v1014, %v1010
    %v1251 = vpack.c.b16 %v1019, %v1015
    %v1252 = vpack.c.b16 %v1020, %v1016
    %v1253 = vpack.c.b16 %v1021, %v1017
    %v1254 = vpack.c.b16 %v1022, %v1018
    %v1255 = vpack.c.b16 %v1027, %v1023
    %v1256 = vpack.c.b16 %v1028, %v1024
    %v1257 = vpack.c.b16 %v1029, %v1025
    %v1258 = vpack.c.b16 %v1030, %v1026
    %v1259 = vpack.c.b16 %v1035, %v1031
    %v1260 = vpack.c.b16 %v1036, %v1032
    %v1261 = vpack.c.b16 %v1037, %v1033
    %v1262 = vpack.c.b16 %v1038, %v1034
    %1487 = vmatprep.subr.bf16.mxu0 %v1040
    %1488 = vmatpush1.bf16.msra.mxu0 %v1039
    %1489 = vmatprep.subr.bf16.mxu0 %v1044
    %1490 = vmatpush1.bf16.msra.mxu0 %v1043
    %1491 = vmatprep.subr.bf16.mxu0 %v1048
    %1492 = vmatpush1.bf16.msra.mxu0 %v1047
    %1493 = vmatprep.subr.bf16.mxu0 %v1052
    %1494 = vmatpush1.bf16.msra.mxu0 %v1051
    %1495 = vmatprep.subr.bf16.mxu0 %v1056
    %1496 = vmatpush1.bf16.msra.mxu0 %v1055
    %1497 = vmatprep.subr.bf16.mxu0 %v1060
    %1498 = vmatpush1.bf16.msra.mxu0 %v1059
    %1499 = vmatprep.subr.bf16.mxu0 %v1064
    %1500 = vmatpush1.bf16.msra.mxu0 %v1063
    %1501 = vmatprep.subr.bf16.mxu0 %v1068
    %1502 = vmatpush1.bf16.msra.mxu0 %v1067
    %1503 = vmatprep.subr.bf16.mxu0 %v1072
    %1504 = vmatpush1.bf16.msra.mxu0 %v1071
    %1505 = vmatprep.subr.bf16.mxu0 %v1076
    %1506 = vmatpush1.bf16.msra.mxu0 %v1075
    %1507 = vmatprep.subr.bf16.mxu0 %v1080
    %1508 = vmatpush1.bf16.msra.mxu0 %v1079
    %1509 = vmatprep.subr.bf16.mxu0 %v1084
    %1510 = vmatpush1.bf16.msra.mxu0 %v1083
    %1511 = vmatprep.subr.bf16.mxu0 %v1088
    %1512 = vmatpush1.bf16.msra.mxu0 %v1087
    %1513 = vmatprep.subr.bf16.mxu0 %v1092
    %1514 = vmatpush1.bf16.msra.mxu0 %v1091
    %1515 = vmatprep.subr.bf16.mxu0 %v1096
    %1516 = vmatpush1.bf16.msra.mxu0 %v1095
    %1517 = vmatprep.subr.bf16.mxu0 %v1100
    %1518 = vmatpush1.bf16.msra.mxu0 %v1099
    %1519 = vmatprep.mubr.bf16.mxu0 %v354
    %1520 = vmatmul.mubr.bf16.gmra.mrb[0].mxu0 %v353
    %v1521 = vpop.f32.mrb[0].mxu0
    %v1522 = vadd.f32 %v314, %v1521
    %v1523 = vpop.f32.mrb[0].mxu0
    %v1524 = vadd.f32 %v318, %v1523
    %v1525 = vpop.f32.mrb[0].mxu0
    %v1526 = vadd.f32 %v314, %v1525
    %v1527 = vpop.f32.mrb[0].mxu0
    %v1528 = vadd.f32 %v318, %v1527
    %1529 = vdwg.mxu0
    %1530 = vmatprep.subr.bf16.mxu0 %v1104
    %1531 = vmatpush1.bf16.msra.mxu0 %v1103
    %1532 = vmatprep.subr.bf16.mxu0 %v1108
    %1533 = vmatpush1.bf16.msra.mxu0 %v1107
    %1534 = vmatprep.subr.bf16.mxu0 %v1112
    %1535 = vmatpush1.bf16.msra.mxu0 %v1111
    %1536 = vmatprep.subr.bf16.mxu0 %v1116
    %1537 = vmatpush1.bf16.msra.mxu0 %v1115
    %1538 = vmatprep.subr.bf16.mxu0 %v1120
    %1539 = vmatpush1.bf16.msra.mxu0 %v1119
    %1540 = vmatprep.subr.bf16.mxu0 %v1124
    %1541 = vmatpush1.bf16.msra.mxu0 %v1123
    %1542 = vmatprep.subr.bf16.mxu0 %v1128
    %1543 = vmatpush1.bf16.msra.mxu0 %v1127
    %1544 = vmatprep.subr.bf16.mxu0 %v1132
    %1545 = vmatpush1.bf16.msra.mxu0 %v1131
    %1546 = vmatprep.subr.bf16.mxu0 %v1136
    %1547 = vmatpush1.bf16.msra.mxu0 %v1135
    %1548 = vmatprep.subr.bf16.mxu0 %v1140
    %1549 = vmatpush1.bf16.msra.mxu0 %v1139
    %1550 = vmatprep.subr.bf16.mxu0 %v1144
    %1551 = vmatpush1.bf16.msra.mxu0 %v1143
    %1552 = vmatprep.subr.bf16.mxu0 %v1148
    %1553 = vmatpush1.bf16.msra.mxu0 %v1147
    %1554 = vmatprep.subr.bf16.mxu0 %v1152
    %1555 = vmatpush1.bf16.msra.mxu0 %v1151
    %1556 = vmatprep.subr.bf16.mxu0 %v1156
    %1557 = vmatpush1.bf16.msra.mxu0 %v1155
    %1558 = vmatprep.subr.bf16.mxu0 %v1160
    %1559 = vmatpush1.bf16.msra.mxu0 %v1159
    %1560 = vmatprep.subr.bf16.mxu0 %v1164
    %1561 = vmatpush1.bf16.msra.mxu0 %v1163
    %1562 = vmatprep.mubr.bf16.mxu0 %v356
    %1563 = vmatmul.mubr.bf16.gmra.mrb[0].mxu0 %v355
    %v1564 = vpop.f32.mrb[0].mxu0
    %v1565 = vadd.f32 %v1522, %v1564
    %v1566 = vpop.f32.mrb[0].mxu0
    %v1567 = vadd.f32 %v1524, %v1566
    %v1568 = vpop.f32.mrb[0].mxu0
    %v1569 = vadd.f32 %v1526, %v1568
    %v1570 = vpop.f32.mrb[0].mxu0
    %v1571 = vadd.f32 %v1528, %v1570
    %1572 = vdwg.mxu0
    %1573 = vmatprep.subr.bf16.mxu0 %v1168
    %1574 = vmatpush1.bf16.msra.mxu0 %v1167
    %1575 = vmatprep.subr.bf16.mxu0 %v1172
    %1576 = vmatpush1.bf16.msra.mxu0 %v1171
    %1577 = vmatprep.subr.bf16.mxu0 %v1176
    %1578 = vmatpush1.bf16.msra.mxu0 %v1175
    %1579 = vmatprep.subr.bf16.mxu0 %v1180
    %1580 = vmatpush1.bf16.msra.mxu0 %v1179
    %1581 = vmatprep.subr.bf16.mxu0 %v1184
    %1582 = vmatpush1.bf16.msra.mxu0 %v1183
    %1583 = vmatprep.subr.bf16.mxu0 %v1188
    %1584 = vmatpush1.bf16.msra.mxu0 %v1187
    %1585 = vmatprep.subr.bf16.mxu0 %v1192
    %1586 = vmatpush1.bf16.msra.mxu0 %v1191
    %1587 = vmatprep.subr.bf16.mxu0 %v1196
    %1588 = vmatpush1.bf16.msra.mxu0 %v1195
    %1589 = vmatprep.subr.bf16.mxu0 %v1200
    %1590 = vmatpush1.bf16.msra.mxu0 %v1199
    %1591 = vmatprep.subr.bf16.mxu0 %v1204
    %1592 = vmatpush1.bf16.msra.mxu0 %v1203
    %1593 = vmatprep.subr.bf16.mxu0 %v1208
    %1594 = vmatpush1.bf16.msra.mxu0 %v1207
    %1595 = vmatprep.subr.bf16.mxu0 %v1212
    %1596 = vmatpush1.bf16.msra.mxu0 %v1211
    %1597 = vmatprep.subr.bf16.mxu0 %v1216
    %1598 = vmatpush1.bf16.msra.mxu0 %v1215
    %1599 = vmatprep.subr.bf16.mxu0 %v1220
    %1600 = vmatpush1.bf16.msra.mxu0 %v1219
    %1601 = vmatprep.subr.bf16.mxu0 %v1224
    %1602 = vmatpush1.bf16.msra.mxu0 %v1223
    %1603 = vmatprep.subr.bf16.mxu0 %v1228
    %1604 = vmatpush1.bf16.msra.mxu0 %v1227
    %1605 = vmatprep.mubr.bf16.mxu0 %v358
    %1606 = vmatmul.mubr.bf16.gmra.mrb[0].mxu0 %v357
    %v1607 = vpop.f32.mrb[0].mxu0
    %v1608 = vadd.f32 %v1565, %v1607
    %v1609 = vpop.f32.mrb[0].mxu0
    %v1610 = vadd.f32 %v1567, %v1609
    %v1611 = vpop.f32.mrb[0].mxu0
    %v1612 = vadd.f32 %v1569, %v1611
    %v1613 = vpop.f32.mrb[0].mxu0
    %v1614 = vadd.f32 %v1571, %v1613
    %1615 = vdwg.mxu0
    %1616 = vmatprep.subr.bf16.mxu0 %v1232
    %1617 = vmatpush1.bf16.msra.mxu0 %v1231
    %1618 = vmatprep.subr.bf16.mxu0 %v1236
    %1619 = vmatpush1.bf16.msra.mxu0 %v1235
    %1620 = vmatprep.subr.bf16.mxu0 %v1240
    %1621 = vmatpush1.bf16.msra.mxu0 %v1239
    %1622 = vmatprep.subr.bf16.mxu0 %v1244
    %1623 = vmatpush1.bf16.msra.mxu0 %v1243
    %1624 = vmatprep.subr.bf16.mxu0 %v1248
    %1625 = vmatpush1.bf16.msra.mxu0 %v1247
    %1626 = vmatprep.subr.bf16.mxu0 %v1252
    %1627 = vmatpush1.bf16.msra.mxu0 %v1251
    %1628 = vmatprep.subr.bf16.mxu0 %v1256
    %1629 = vmatpush1.bf16.msra.mxu0 %v1255
    %1630 = vmatprep.subr.bf16.mxu0 %v1260
    %1631 = vmatpush1.bf16.msra.mxu0 %v1259
    %1632 = vmatprep.subr.bf16.mxu0 0
    %1633 = vmatpush1.bf16.msra.mxu0 0
    %1634 = vmatprep.subr.bf16.mxu0 0
    %1635 = vmatpush1.bf16.msra.mxu0 0
    %1636 = vmatprep.subr.bf16.mxu0 0
    %1637 = vmatpush1.bf16.msra.mxu0 0
    %1638 = vmatprep.subr.bf16.mxu0 0
    %1639 = vmatpush1.bf16.msra.mxu0 0
    %1640 = vmatprep.subr.bf16.mxu0 0
    %1641 = vmatpush1.bf16.msra.mxu0 0
    %1642 = vmatprep.subr.bf16.mxu0 0
    %1643 = vmatpush1.bf16.msra.mxu0 0
    %1644 = vmatprep.subr.bf16.mxu0 0
    %1645 = vmatpush1.bf16.msra.mxu0 0
    %1646 = vmatprep.subr.bf16.mxu0 0
    %1647 = vmatpush1.bf16.msra.mxu0 0
    %1648 = vmatprep.mubr.bf16.mxu0 0
    %1649 = vmatmul.mubr.bf16.gmra.mrb[0].mxu0 %v359
    %v1650 = vpop.f32.mrb[0].mxu0
    %v1651 = vadd.f32 %v1608, %v1650
    %v1652 = vpop.f32.mrb[0].mxu0
    %v1653 = vadd.f32 %v1610, %v1652
    %v1654 = vpop.f32.mrb[0].mxu0
    %v1655 = vadd.f32 %v1612, %v1654
    %v1656 = vpop.f32.mrb[0].mxu0
    %v1657 = vadd.f32 %v1614, %v1656
    %1658 = vdwg.mxu0
    %1659 = vmatprep.subr.bf16.mxu0 %v1042
    %1660 = vmatpush1.bf16.msra.mxu0 %v1041
    %1661 = vmatprep.subr.bf16.mxu0 %v1046
    %1662 = vmatpush1.bf16.msra.mxu0 %v1045
    %1663 = vmatprep.subr.bf16.mxu0 %v1050
    %1664 = vmatpush1.bf16.msra.mxu0 %v1049
    %1665 = vmatprep.subr.bf16.mxu0 %v1054
    %1666 = vmatpush1.bf16.msra.mxu0 %v1053
    %1667 = vmatprep.subr.bf16.mxu0 %v1058
    %1668 = vmatpush1.bf16.msra.mxu0 %v1057
    %1669 = vmatprep.subr.bf16.mxu0 %v1062
    %1670 = vmatpush1.bf16.msra.mxu0 %v1061
    %1671 = vmatprep.subr.bf16.mxu0 %v1066
    %1672 = vmatpush1.bf16.msra.mxu0 %v1065
    %1673 = vmatprep.subr.bf16.mxu0 %v1070
    %1674 = vmatpush1.bf16.msra.mxu0 %v1069
    %1675 = vmatprep.subr.bf16.mxu0 %v1074
    %1676 = vmatpush1.bf16.msra.mxu0 %v1073
    %1677 = vmatprep.subr.bf16.mxu0 %v1078
    %1678 = vmatpush1.bf16.msra.mxu0 %v1077
    %1679 = vmatprep.subr.bf16.mxu0 %v1082
    %1680 = vmatpush1.bf16.msra.mxu0 %v1081
    %1681 = vmatprep.subr.bf16.mxu0 %v1086
    %1682 = vmatpush1.bf16.msra.mxu0 %v1085
    %1683 = vmatprep.subr.bf16.mxu0 %v1090
    %1684 = vmatpush1.bf16.msra.mxu0 %v1089
    %1685 = vmatprep.subr.bf16.mxu0 %v1094
    %1686 = vmatpush1.bf16.msra.mxu0 %v1093
    %1687 = vmatprep.subr.bf16.mxu0 %v1098
    %1688 = vmatpush1.bf16.msra.mxu0 %v1097
    %1689 = vmatprep.subr.bf16.mxu0 %v1102
    %1690 = vmatpush1.bf16.msra.mxu0 %v1101
    %1691 = vmatprep.mubr.bf16.mxu0 %v354
    %1692 = vmatmul.mubr.bf16.gmra.mrb[0].mxu0 %v353
    %v1693 = vpop.f32.mrb[0].mxu0
    %v1694 = vadd.f32 %v322, %v1693
    %v1695 = vpop.f32.mrb[0].mxu0
    %v1696 = vadd.f32 %v326, %v1695
    %v1697 = vpop.f32.mrb[0].mxu0
    %v1698 = vadd.f32 %v322, %v1697
    %v1699 = vpop.f32.mrb[0].mxu0
    %v1700 = vadd.f32 %v326, %v1699
    %1701 = vdwg.mxu0
    %1702 = vmatprep.subr.bf16.mxu0 %v1106
    %1703 = vmatpush1.bf16.msra.mxu0 %v1105
    %1704 = vmatprep.subr.bf16.mxu0 %v1110
    %1705 = vmatpush1.bf16.msra.mxu0 %v1109
    %1706 = vmatprep.subr.bf16.mxu0 %v1114
    %1707 = vmatpush1.bf16.msra.mxu0 %v1113
    %1708 = vmatprep.subr.bf16.mxu0 %v1118
    %1709 = vmatpush1.bf16.msra.mxu0 %v1117
    %1710 = vmatprep.subr.bf16.mxu0 %v1122
    %1711 = vmatpush1.bf16.msra.mxu0 %v1121
    %1712 = vmatprep.subr.bf16.mxu0 %v1126
    %1713 = vmatpush1.bf16.msra.mxu0 %v1125
    %1714 = vmatprep.subr.bf16.mxu0 %v1130
    %1715 = vmatpush1.bf16.msra.mxu0 %v1129
    %1716 = vmatprep.subr.bf16.mxu0 %v1134
    %1717 = vmatpush1.bf16.msra.mxu0 %v1133
    %1718 = vmatprep.subr.bf16.mxu0 %v1138
    %1719 = vmatpush1.bf16.msra.mxu0 %v1137
    %1720 = vmatprep.subr.bf16.mxu0 %v1142
    %1721 = vmatpush1.bf16.msra.mxu0 %v1141
    %1722 = vmatprep.subr.bf16.mxu0 %v1146
    %1723 = vmatpush1.bf16.msra.mxu0 %v1145
    %1724 = vmatprep.subr.bf16.mxu0 %v1150
    %1725 = vmatpush1.bf16.msra.mxu0 %v1149
    %1726 = vmatprep.subr.bf16.mxu0 %v1154
    %1727 = vmatpush1.bf16.msra.mxu0 %v1153
    %1728 = vmatprep.subr.bf16.mxu0 %v1158
    %1729 = vmatpush1.bf16.msra.mxu0 %v1157
    %1730 = vmatprep.subr.bf16.mxu0 %v1162
    %1731 = vmatpush1.bf16.msra.mxu0 %v1161
    %1732 = vmatprep.subr.bf16.mxu0 %v1166
    %1733 = vmatpush1.bf16.msra.mxu0 %v1165
    %1734 = vmatprep.mubr.bf16.mxu0 %v356
    %1735 = vmatmul.mubr.bf16.gmra.mrb[0].mxu0 %v355
    %v1736 = vpop.f32.mrb[0].mxu0
    %v1737 = vadd.f32 %v1694, %v1736
    %v1738 = vpop.f32.mrb[0].mxu0
    %v1739 = vadd.f32 %v1696, %v1738
    %v1740 = vpop.f32.mrb[0].mxu0
    %v1741 = vadd.f32 %v1698, %v1740
    %v1742 = vpop.f32.mrb[0].mxu0
    %v1743 = vadd.f32 %v1700, %v1742
    %1744 = vdwg.mxu0
    %1745 = vmatprep.subr.bf16.mxu0 %v1170
    %1746 = vmatpush1.bf16.msra.mxu0 %v1169
    %1747 = vmatprep.subr.bf16.mxu0 %v1174
    %1748 = vmatpush1.bf16.msra.mxu0 %v1173
    %1749 = vmatprep.subr.bf16.mxu0 %v1178
    %1750 = vmatpush1.bf16.msra.mxu0 %v1177
    %1751 = vmatprep.subr.bf16.mxu0 %v1182
    %1752 = vmatpush1.bf16.msra.mxu0 %v1181
    %1753 = vmatprep.subr.bf16.mxu0 %v1186
    %1754 = vmatpush1.bf16.msra.mxu0 %v1185
    %1755 = vmatprep.subr.bf16.mxu0 %v1190
    %1756 = vmatpush1.bf16.msra.mxu0 %v1189
    %1757 = vmatprep.subr.bf16.mxu0 %v1194
    %1758 = vmatpush1.bf16.msra.mxu0 %v1193
    %1759 = vmatprep.subr.bf16.mxu0 %v1198
    %1760 = vmatpush1.bf16.msra.mxu0 %v1197
    %1761 = vmatprep.subr.bf16.mxu0 %v1202
    %1762 = vmatpush1.bf16.msra.mxu0 %v1201
    %1763 = vmatprep.subr.bf16.mxu0 %v1206
    %1764 = vmatpush1.bf16.msra.mxu0 %v1205
    %1765 = vmatprep.subr.bf16.mxu0 %v1210
    %1766 = vmatpush1.bf16.msra.mxu0 %v1209
    %1767 = vmatprep.subr.bf16.mxu0 %v1214
    %1768 = vmatpush1.bf16.msra.mxu0 %v1213
    %1769 = vmatprep.subr.bf16.mxu0 %v1218
    %1770 = vmatpush1.bf16.msra.mxu0 %v1217
    %1771 = vmatprep.subr.bf16.mxu0 %v1222
    %1772 = vmatpush1.bf16.msra.mxu0 %v1221
    %1773 = vmatprep.subr.bf16.mxu0 %v1226
    %1774 = vmatpush1.bf16.msra.mxu0 %v1225
    %1775 = vmatprep.subr.bf16.mxu0 %v1230
    %1776 = vmatpush1.bf16.msra.mxu0 %v1229
    %1777 = vmatprep.mubr.bf16.mxu0 %v358
    %1778 = vmatmul.mubr.bf16.gmra.mrb[0].mxu0 %v357
    %v1779 = vpop.f32.mrb[0].mxu0
    %v1780 = vadd.f32 %v1737, %v1779
    %v1781 = vpop.f32.mrb[0].mxu0
    %v1782 = vadd.f32 %v1739, %v1781
    %v1783 = vpop.f32.mrb[0].mxu0
    %v1784 = vadd.f32 %v1741, %v1783
    %v1785 = vpop.f32.mrb[0].mxu0
    %v1786 = vadd.f32 %v1743, %v1785
    %1787 = vdwg.mxu0
    %1788 = vmatprep.subr.bf16.mxu0 %v1234
    %1789 = vmatpush1.bf16.msra.mxu0 %v1233
    %1790 = vmatprep.subr.bf16.mxu0 %v1238
    %1791 = vmatpush1.bf16.msra.mxu0 %v1237
    %1792 = vmatprep.subr.bf16.mxu0 %v1242
    %1793 = vmatpush1.bf16.msra.mxu0 %v1241
    %1794 = vmatprep.subr.bf16.mxu0 %v1246
    %1795 = vmatpush1.bf16.msra.mxu0 %v1245
    %1796 = vmatprep.subr.bf16.mxu0 %v1250
    %1797 = vmatpush1.bf16.msra.mxu0 %v1249
    %1798 = vmatprep.subr.bf16.mxu0 %v1254
    %1799 = vmatpush1.bf16.msra.mxu0 %v1253
    %1800 = vmatprep.subr.bf16.mxu0 %v1258
    %1801 = vmatpush1.bf16.msra.mxu0 %v1257
    %1802 = vmatprep.subr.bf16.mxu0 %v1262
    %1803 = vmatpush1.bf16.msra.mxu0 %v1261
    %1804 = vmatprep.subr.bf16.mxu0 0
    %1805 = vmatpush1.bf16.msra.mxu0 0
    %1806 = vmatprep.subr.bf16.mxu0 0
    %1807 = vmatpush1.bf16.msra.mxu0 0
    %1808 = vmatprep.subr.bf16.mxu0 0
    %1809 = vmatpush1.bf16.msra.mxu0 0
    %1810 = vmatprep.subr.bf16.mxu0 0
    %1811 = vmatpush1.bf16.msra.mxu0 0
    %1812 = vmatprep.subr.bf16.mxu0 0
    %1813 = vmatpush1.bf16.msra.mxu0 0
    %1814 = vmatprep.subr.bf16.mxu0 0
    %1815 = vmatpush1.bf16.msra.mxu0 0
    %1816 = vmatprep.subr.bf16.mxu0 0
    %1817 = vmatpush1.bf16.msra.mxu0 0
    %1818 = vmatprep.subr.bf16.mxu0 0
    %1819 = vmatpush1.bf16.msra.mxu0 0
    %1820 = vmatprep.mubr.bf16.mxu0 0
    %1821 = vmatmul.mubr.bf16.gmra.mrb[0].mxu0 %v359
    %v1822 = vpop.f32.mrb[0].mxu0
    %v1823 = vadd.f32 %v1780, %v1822
    %v1824 = vpop.f32.mrb[0].mxu0
    %v1825 = vadd.f32 %v1782, %v1824
    %v1826 = vpop.f32.mrb[0].mxu0
    %v1827 = vadd.f32 %v1784, %v1826
    %v1828 = vpop.f32.mrb[0].mxu0
    %v1829 = vadd.f32 %v1786, %v1828
    %1830 = vdwg.mxu0
    %v1831 = vmax.f32 %v1651, 0.0
    %v1832 = vmax.f32 %v1653, 0.0
    %v1833 = vmax.f32 %v1823, 0.0
    %v1834 = vmax.f32 %v1825, 0.0
    %v1835 = vmax.f32 %v1655, 0.0
    %v1836 = vmax.f32 %v1657, 0.0
    %v1837 = vmax.f32 %v1827, 0.0
    %v1838 = vmax.f32 %v1829, 0.0
    %v1839 = vpack.c.bf16 %v1835, %v1831
    %v1840 = vpack.c.bf16 %v1836, %v1832
    %v1841 = vpack.c.bf16 %v1837, %v1833
    %v1842 = vpack.c.bf16 %v1838, %v1834
    %v1843 = vld [vmem:[#allocation7] sm:$0xff]
    %v1844 = vld [vmem:[#allocation7 + $0x8] sm:$0xff]
    %v1845 = vld [vmem:[#allocation7 + $0x10] sm:$0xff]
    %v1846 = vld [vmem:[#allocation7 + $0x18] sm:$0xff]
    %v1847 = vld [vmem:[#allocation7 + $0x20] sm:$0xff]
    %v1848 = vld [vmem:[#allocation7 + $0x28] sm:$0xff]
    %v1849 = vld [vmem:[#allocation7 + $0x30] sm:$0xff]
    %v1850 = vld [vmem:[#allocation7 + $0x38] sm:$0xff]
    %v1851 = vld [vmem:[#allocation7 + $0x40] sm:$0xff]
    %v1852 = vld [vmem:[#allocation7 + $0x48] sm:$0xff]
    %v1853 = vld [vmem:[#allocation7 + $0x50] sm:$0xff]
    %v1854 = vld [vmem:[#allocation7 + $0x58] sm:$0xff]
    %v1855 = vld [vmem:[#allocation7 + $0x60] sm:$0xff]
    %v1856 = vld [vmem:[#allocation7 + $0x68] sm:$0xff]
    %v1857 = vld [vmem:[#allocation7 + $0x70] sm:$0xff]
    %v1858 = vld [vmem:[#allocation7 + $0x78] sm:$0xff]
    %v1859 = vld [vmem:[#allocation7 + $0x80] sm:$0xff]
    %v1860 = vld [vmem:[#allocation7 + $0x88] sm:$0xff]
    %v1861 = vld [vmem:[#allocation7 + $0x90] sm:$0xff]
    %v1862 = vld [vmem:[#allocation7 + $0x98] sm:$0xff]
    %v1863 = vld [vmem:[#allocation7 + $0xa0] sm:$0xff]
    %v1864 = vld [vmem:[#allocation7 + $0xa8] sm:$0xff]
    %v1865 = vld [vmem:[#allocation7 + $0xb0] sm:$0xff]
    %v1866 = vld [vmem:[#allocation7 + $0xb8] sm:$0xff]
    %v1867 = vld [vmem:[#allocation7 + $0xc0] sm:$0xff]
    %v1868 = vld [vmem:[#allocation7 + $0xc8] sm:$0xff]
    %v1869 = vld [vmem:[#allocation7 + $0xd0] sm:$0xff]
    %v1870 = vld [vmem:[#allocation7 + $0xd8] sm:$0xff]
    %v1871 = vld [vmem:[#allocation7 + $0xe0] sm:$0xff]
    %v1872 = vld [vmem:[#allocation7 + $0xe8] sm:$0xff]
    %v1873 = vld [vmem:[#allocation7 + $0xf0] sm:$0xff]
    %v1874 = vld [vmem:[#allocation7 + $0xf8] sm:$0xff]
    %v1875 = vld [vmem:[#allocation7 + $0x100] sm:$0xff]
    %v1876 = vld [vmem:[#allocation7 + $0x108] sm:$0xff]
    %v1877 = vld [vmem:[#allocation7 + $0x110] sm:$0xff]
    %v1878 = vld [vmem:[#allocation7 + $0x118] sm:$0xff]
    %v1879 = vld [vmem:[#allocation7 + $0x120] sm:$0xff]
    %v1880 = vld [vmem:[#allocation7 + $0x128] sm:$0xff]
    %v1881 = vld [vmem:[#allocation7 + $0x130] sm:$0xff]
    %v1882 = vld [vmem:[#allocation7 + $0x138] sm:$0xff]
    %v1883 = vld [vmem:[#allocation7 + $0x140] sm:$0xff]
    %v1884 = vld [vmem:[#allocation7 + $0x148] sm:$0xff]
    %v1885 = vld [vmem:[#allocation7 + $0x150] sm:$0xff]
    %v1886 = vld [vmem:[#allocation7 + $0x158] sm:$0xff]
    %v1887 = vld [vmem:[#allocation7 + $0x160] sm:$0xff]
    %v1888 = vld [vmem:[#allocation7 + $0x168] sm:$0xff]
    %v1889 = vld [vmem:[#allocation7 + $0x170] sm:$0xff]
    %v1890 = vld [vmem:[#allocation7 + $0x178] sm:$0xff]
    %v1891 = vld [vmem:[#allocation7 + $0x180] sm:$0xff]
    %v1892 = vld [vmem:[#allocation7 + $0x188] sm:$0xff]
    %v1893 = vld [vmem:[#allocation7 + $0x190] sm:$0xff]
    %v1894 = vld [vmem:[#allocation7 + $0x198] sm:$0xff]
    %v1895 = vld [vmem:[#allocation7 + $0x1a0] sm:$0xff]
    %v1896 = vld [vmem:[#allocation7 + $0x1a8] sm:$0xff]
    %v1897 = vld [vmem:[#allocation7 + $0x1b0] sm:$0xff]
    %v1898 = vld [vmem:[#allocation7 + $0x1b8] sm:$0xff]
    %v1899 = vld [vmem:[#allocation7 + $0x1c0] sm:$0xff]
    %v1900 = vld [vmem:[#allocation7 + $0x1c8] sm:$0xff]
    %v1901 = vld [vmem:[#allocation7 + $0x1d0] sm:$0xff]
    %v1902 = vld [vmem:[#allocation7 + $0x1d8] sm:$0xff]
    %v1903 = vld [vmem:[#allocation7 + $0x1e0] sm:$0xff]
    %v1904 = vld [vmem:[#allocation7 + $0x1e8] sm:$0xff]
    %v1905 = vld [vmem:[#allocation7 + $0x1f0] sm:$0xff]
    %v1906 = vld [vmem:[#allocation7 + $0x1f8] sm:$0xff]
    %v1907 = vld [vmem:[%s4 + $0x4] sm:$0x3]
    %v1909 = vlaneseq
    %v1910 = vshrl.u32 %v1909, 7
    %v1911 = vsub.s32 0, %v1910
    %v1912 = vrot.slane %v1907, %v1911
    %v1913 = vlaneseq
    %v1914 = vshrl.u32 %v1913, 7
    %v1915 = vsub.s32 1, %v1914
    %v1916 = vrot.slane %v1907, %v1915
    %v1983 = vunpack.c.l.b16 %v1843
    %v1984 = vunpack.c.h.b16 %v1843
    %v1985 = vunpack.c.l.b16 %v1844
    %v1986 = vunpack.c.h.b16 %v1844
    %v1987 = vunpack.c.l.b16 %v1845
    %v1988 = vunpack.c.h.b16 %v1845
    %v1989 = vunpack.c.l.b16 %v1846
    %v1990 = vunpack.c.h.b16 %v1846
    %v1991 = vunpack.c.l.b16 %v1847
    %v1992 = vunpack.c.h.b16 %v1847
    %v1993 = vunpack.c.l.b16 %v1848
    %v1994 = vunpack.c.h.b16 %v1848
    %v1995 = vunpack.c.l.b16 %v1849
    %v1996 = vunpack.c.h.b16 %v1849
    %v1997 = vunpack.c.l.b16 %v1850
    %v1998 = vunpack.c.h.b16 %v1850
    %v1999 = vunpack.c.l.b16 %v1851
    %v2000 = vunpack.c.h.b16 %v1851
    %v2001 = vunpack.c.l.b16 %v1852
    %v2002 = vunpack.c.h.b16 %v1852
    %v2003 = vunpack.c.l.b16 %v1853
    %v2004 = vunpack.c.h.b16 %v1853
    %v2005 = vunpack.c.l.b16 %v1854
    %v2006 = vunpack.c.h.b16 %v1854
    %v2007 = vunpack.c.l.b16 %v1855
    %v2008 = vunpack.c.h.b16 %v1855
    %v2009 = vunpack.c.l.b16 %v1856
    %v2010 = vunpack.c.h.b16 %v1856
    %v2011 = vunpack.c.l.b16 %v1857
    %v2012 = vunpack.c.h.b16 %v1857
    %v2013 = vunpack.c.l.b16 %v1858
    %v2014 = vunpack.c.h.b16 %v1858
    %v2015 = vunpack.c.l.b16 %v1859
    %v2016 = vunpack.c.h.b16 %v1859
    %v2017 = vunpack.c.l.b16 %v1860
    %v2018 = vunpack.c.h.b16 %v1860
    %v2019 = vunpack.c.l.b16 %v1861
    %v2020 = vunpack.c.h.b16 %v1861
    %v2021 = vunpack.c.l.b16 %v1862
    %v2022 = vunpack.c.h.b16 %v1862
    %v2023 = vunpack.c.l.b16 %v1863
    %v2024 = vunpack.c.h.b16 %v1863
    %v2025 = vunpack.c.l.b16 %v1864
    %v2026 = vunpack.c.h.b16 %v1864
    %v2027 = vunpack.c.l.b16 %v1865
    %v2028 = vunpack.c.h.b16 %v1865
    %v2029 = vunpack.c.l.b16 %v1866
    %v2030 = vunpack.c.h.b16 %v1866
    %v2031 = vunpack.c.l.b16 %v1867
    %v2032 = vunpack.c.h.b16 %v1867
    %v2033 = vunpack.c.l.b16 %v1868
    %v2034 = vunpack.c.h.b16 %v1868
    %v2035 = vunpack.c.l.b16 %v1869
    %v2036 = vunpack.c.h.b16 %v1869
    %v2037 = vunpack.c.l.b16 %v1870
    %v2038 = vunpack.c.h.b16 %v1870
    %v2039 = vunpack.c.l.b16 %v1871
    %v2040 = vunpack.c.h.b16 %v1871
    %v2041 = vunpack.c.l.b16 %v1872
    %v2042 = vunpack.c.h.b16 %v1872
    %v2043 = vunpack.c.l.b16 %v1873
    %v2044 = vunpack.c.h.b16 %v1873
    %v2045 = vunpack.c.l.b16 %v1874
    %v2046 = vunpack.c.h.b16 %v1874
    %v2047 = vunpack.c.l.b16 %v1875
    %v2048 = vunpack.c.h.b16 %v1875
    %v2049 = vunpack.c.l.b16 %v1876
    %v2050 = vunpack.c.h.b16 %v1876
    %v2051 = vunpack.c.l.b16 %v1877
    %v2052 = vunpack.c.h.b16 %v1877
    %v2053 = vunpack.c.l.b16 %v1878
    %v2054 = vunpack.c.h.b16 %v1878
    %v2055 = vunpack.c.l.b16 %v1879
    %v2056 = vunpack.c.h.b16 %v1879
    %v2057 = vunpack.c.l.b16 %v1880
    %v2058 = vunpack.c.h.b16 %v1880
    %v2059 = vunpack.c.l.b16 %v1881
    %v2060 = vunpack.c.h.b16 %v1881
    %v2061 = vunpack.c.l.b16 %v1882
    %v2062 = vunpack.c.h.b16 %v1882
    %v2063 = vunpack.c.l.b16 %v1883
    %v2064 = vunpack.c.h.b16 %v1883
    %v2065 = vunpack.c.l.b16 %v1884
    %v2066 = vunpack.c.h.b16 %v1884
    %v2067 = vunpack.c.l.b16 %v1885
    %v2068 = vunpack.c.h.b16 %v1885
    %v2069 = vunpack.c.l.b16 %v1886
    %v2070 = vunpack.c.h.b16 %v1886
    %v2071 = vunpack.c.l.b16 %v1887
    %v2072 = vunpack.c.h.b16 %v1887
    %v2073 = vunpack.c.l.b16 %v1888
    %v2074 = vunpack.c.h.b16 %v1888
    %v2075 = vunpack.c.l.b16 %v1889
    %v2076 = vunpack.c.h.b16 %v1889
    %v2077 = vunpack.c.l.b16 %v1890
    %v2078 = vunpack.c.h.b16 %v1890
    %v2079 = vunpack.c.l.b16 %v1891
    %v2080 = vunpack.c.h.b16 %v1891
    %v2081 = vunpack.c.l.b16 %v1892
    %v2082 = vunpack.c.h.b16 %v1892
    %v2083 = vunpack.c.l.b16 %v1893
    %v2084 = vunpack.c.h.b16 %v1893
    %v2085 = vunpack.c.l.b16 %v1894
    %v2086 = vunpack.c.h.b16 %v1894
    %v2087 = vunpack.c.l.b16 %v1895
    %v2088 = vunpack.c.h.b16 %v1895
    %v2089 = vunpack.c.l.b16 %v1896
    %v2090 = vunpack.c.h.b16 %v1896
    %v2091 = vunpack.c.l.b16 %v1897
    %v2092 = vunpack.c.h.b16 %v1897
    %v2093 = vunpack.c.l.b16 %v1898
    %v2094 = vunpack.c.h.b16 %v1898
    %v2095 = vunpack.c.l.b16 %v1899
    %v2096 = vunpack.c.h.b16 %v1899
    %v2097 = vunpack.c.l.b16 %v1900
    %v2098 = vunpack.c.h.b16 %v1900
    %v2099 = vunpack.c.l.b16 %v1901
    %v2100 = vunpack.c.h.b16 %v1901
    %v2101 = vunpack.c.l.b16 %v1902
    %v2102 = vunpack.c.h.b16 %v1902
    %v2103 = vunpack.c.l.b16 %v1903
    %v2104 = vunpack.c.h.b16 %v1903
    %v2105 = vunpack.c.l.b16 %v1904
    %v2106 = vunpack.c.h.b16 %v1904
    %v2107 = vunpack.c.l.b16 %v1905
    %v2108 = vunpack.c.h.b16 %v1905
    %v2109 = vunpack.c.l.b16 %v1906
    %v2110 = vunpack.c.h.b16 %v1906
    %v2111 = vpack.c.b16 %v1985, %v1983
    %v2112 = vpack.c.b16 %v1986, %v1984
    %v2113 = vpack.c.b16 %v1989, %v1987
    %v2114 = vpack.c.b16 %v1990, %v1988
    %v2115 = vpack.c.b16 %v1993, %v1991
    %v2116 = vpack.c.b16 %v1994, %v1992
    %v2117 = vpack.c.b16 %v1997, %v1995
    %v2118 = vpack.c.b16 %v1998, %v1996
    %v2119 = vpack.c.b16 %v2001, %v1999
    %v2120 = vpack.c.b16 %v2002, %v2000
    %v2121 = vpack.c.b16 %v2005, %v2003
    %v2122 = vpack.c.b16 %v2006, %v2004
    %v2123 = vpack.c.b16 %v2009, %v2007
    %v2124 = vpack.c.b16 %v2010, %v2008
    %v2125 = vpack.c.b16 %v2013, %v2011
    %v2126 = vpack.c.b16 %v2014, %v2012
    %v2127 = vpack.c.b16 %v2017, %v2015
    %v2128 = vpack.c.b16 %v2018, %v2016
    %v2129 = vpack.c.b16 %v2021, %v2019
    %v2130 = vpack.c.b16 %v2022, %v2020
    %v2131 = vpack.c.b16 %v2025, %v2023
    %v2132 = vpack.c.b16 %v2026, %v2024
    %v2133 = vpack.c.b16 %v2029, %v2027
    %v2134 = vpack.c.b16 %v2030, %v2028
    %v2135 = vpack.c.b16 %v2033, %v2031
    %v2136 = vpack.c.b16 %v2034, %v2032
    %v2137 = vpack.c.b16 %v2037, %v2035
    %v2138 = vpack.c.b16 %v2038, %v2036
    %v2139 = vpack.c.b16 %v2041, %v2039
    %v2140 = vpack.c.b16 %v2042, %v2040
    %v2141 = vpack.c.b16 %v2045, %v2043
    %v2142 = vpack.c.b16 %v2046, %v2044
    %v2143 = vpack.c.b16 %v2049, %v2047
    %v2144 = vpack.c.b16 %v2050, %v2048
    %v2145 = vpack.c.b16 %v2053, %v2051
    %v2146 = vpack.c.b16 %v2054, %v2052
    %v2147 = vpack.c.b16 %v2057, %v2055
    %v2148 = vpack.c.b16 %v2058, %v2056
    %v2149 = vpack.c.b16 %v2061, %v2059
    %v2150 = vpack.c.b16 %v2062, %v2060
    %v2151 = vpack.c.b16 %v2065, %v2063
    %v2152 = vpack.c.b16 %v2066, %v2064
    %v2153 = vpack.c.b16 %v2069, %v2067
    %v2154 = vpack.c.b16 %v2070, %v2068
    %v2155 = vpack.c.b16 %v2073, %v2071
    %v2156 = vpack.c.b16 %v2074, %v2072
    %v2157 = vpack.c.b16 %v2077, %v2075
    %v2158 = vpack.c.b16 %v2078, %v2076
    %v2159 = vpack.c.b16 %v2081, %v2079
    %v2160 = vpack.c.b16 %v2082, %v2080
    %v2161 = vpack.c.b16 %v2085, %v2083
    %v2162 = vpack.c.b16 %v2086, %v2084
    %v2163 = vpack.c.b16 %v2089, %v2087
    %v2164 = vpack.c.b16 %v2090, %v2088
    %v2165 = vpack.c.b16 %v2093, %v2091
    %v2166 = vpack.c.b16 %v2094, %v2092
    %v2167 = vpack.c.b16 %v2097, %v2095
    %v2168 = vpack.c.b16 %v2098, %v2096
    %v2169 = vpack.c.b16 %v2101, %v2099
    %v2170 = vpack.c.b16 %v2102, %v2100
    %v2171 = vpack.c.b16 %v2105, %v2103
    %v2172 = vpack.c.b16 %v2106, %v2104
    %v2173 = vpack.c.b16 %v2109, %v2107
    %v2174 = vpack.c.b16 %v2110, %v2108
    %2239 = vmatprep.subr.bf16.mxu0 %v2112
    %2240 = vmatpush1.bf16.msra.mxu0 %v2111
    %2241 = vmatprep.subr.bf16.mxu0 %v2114
    %2242 = vmatpush1.bf16.msra.mxu0 %v2113
    %2243 = vmatprep.subr.bf16.mxu0 %v2116
    %2244 = vmatpush1.bf16.msra.mxu0 %v2115
    %2245 = vmatprep.subr.bf16.mxu0 %v2118
    %2246 = vmatpush1.bf16.msra.mxu0 %v2117
    %2247 = vmatprep.subr.bf16.mxu0 %v2120
    %2248 = vmatpush1.bf16.msra.mxu0 %v2119
    %2249 = vmatprep.subr.bf16.mxu0 %v2122
    %2250 = vmatpush1.bf16.msra.mxu0 %v2121
    %2251 = vmatprep.subr.bf16.mxu0 %v2124
    %2252 = vmatpush1.bf16.msra.mxu0 %v2123
    %2253 = vmatprep.subr.bf16.mxu0 %v2126
    %2254 = vmatpush1.bf16.msra.mxu0 %v2125
    %2255 = vmatprep.subr.bf16.mxu0 %v2128
    %2256 = vmatpush1.bf16.msra.mxu0 %v2127
    %2257 = vmatprep.subr.bf16.mxu0 %v2130
    %2258 = vmatpush1.bf16.msra.mxu0 %v2129
    %2259 = vmatprep.subr.bf16.mxu0 %v2132
    %2260 = vmatpush1.bf16.msra.mxu0 %v2131
    %2261 = vmatprep.subr.bf16.mxu0 %v2134
    %2262 = vmatpush1.bf16.msra.mxu0 %v2133
    %2263 = vmatprep.subr.bf16.mxu0 %v2136
    %2264 = vmatpush1.bf16.msra.mxu0 %v2135
    %2265 = vmatprep.subr.bf16.mxu0 %v2138
    %2266 = vmatpush1.bf16.msra.mxu0 %v2137
    %2267 = vmatprep.subr.bf16.mxu0 %v2140
    %2268 = vmatpush1.bf16.msra.mxu0 %v2139
    %2269 = vmatprep.subr.bf16.mxu0 %v2142
    %2270 = vmatpush1.bf16.msra.mxu0 %v2141
    %2271 = vmatprep.mubr.bf16.mxu0 %v1840
    %2272 = vmatmul.mubr.bf16.gmra.mrb[0].mxu0 %v1839
    %v2273 = vpop.f32.mrb[0].mxu0
    %v2274 = vadd.f32 %v1912, %v2273
    %v2275 = vpop.f32.mrb[0].mxu0
    %v2276 = vadd.f32 %v1916, %v2275
    %v2277 = vpop.f32.mrb[0].mxu0
    %v2278 = vadd.f32 %v1912, %v2277
    %v2279 = vpop.f32.mrb[0].mxu0
    %v2280 = vadd.f32 %v1916, %v2279
    %2281 = vdwg.mxu0
    %2282 = vmatprep.subr.bf16.mxu0 %v2144
    %2283 = vmatpush1.bf16.msra.mxu0 %v2143
    %2284 = vmatprep.subr.bf16.mxu0 %v2146
    %2285 = vmatpush1.bf16.msra.mxu0 %v2145
    %2286 = vmatprep.subr.bf16.mxu0 %v2148
    %2287 = vmatpush1.bf16.msra.mxu0 %v2147
    %2288 = vmatprep.subr.bf16.mxu0 %v2150
    %2289 = vmatpush1.bf16.msra.mxu0 %v2149
    %2290 = vmatprep.subr.bf16.mxu0 %v2152
    %2291 = vmatpush1.bf16.msra.mxu0 %v2151
    %2292 = vmatprep.subr.bf16.mxu0 %v2154
    %2293 = vmatpush1.bf16.msra.mxu0 %v2153
    %2294 = vmatprep.subr.bf16.mxu0 %v2156
    %2295 = vmatpush1.bf16.msra.mxu0 %v2155
    %2296 = vmatprep.subr.bf16.mxu0 %v2158
    %2297 = vmatpush1.bf16.msra.mxu0 %v2157
    %2298 = vmatprep.subr.bf16.mxu0 %v2160
    %2299 = vmatpush1.bf16.msra.mxu0 %v2159
    %2300 = vmatprep.subr.bf16.mxu0 %v2162
    %2301 = vmatpush1.bf16.msra.mxu0 %v2161
    %2302 = vmatprep.subr.bf16.mxu0 %v2164
    %2303 = vmatpush1.bf16.msra.mxu0 %v2163
    %2304 = vmatprep.subr.bf16.mxu0 %v2166
    %2305 = vmatpush1.bf16.msra.mxu0 %v2165
    %2306 = vmatprep.subr.bf16.mxu0 %v2168
    %2307 = vmatpush1.bf16.msra.mxu0 %v2167
    %2308 = vmatprep.subr.bf16.mxu0 %v2170
    %2309 = vmatpush1.bf16.msra.mxu0 %v2169
    %2310 = vmatprep.subr.bf16.mxu0 %v2172
    %2311 = vmatpush1.bf16.msra.mxu0 %v2171
    %2312 = vmatprep.subr.bf16.mxu0 %v2174
    %2313 = vmatpush1.bf16.msra.mxu0 %v2173
    %2314 = vmatprep.mubr.bf16.mxu0 %v1842
    %2315 = vmatmul.mubr.bf16.gmra.mrb[0].mxu0 %v1841
    %v2316 = vpop.f32.mrb[0].mxu0
    %v2317 = vadd.f32 %v2274, %v2316
    %v2318 = vpop.f32.mrb[0].mxu0
    %v2319 = vadd.f32 %v2276, %v2318
    %v2320 = vpop.f32.mrb[0].mxu0
    %v2321 = vadd.f32 %v2278, %v2320
    %v2322 = vpop.f32.mrb[0].mxu0
    %v2323 = vadd.f32 %v2280, %v2322
    %2324 = vdwg.mxu0
    %v2325 = vmax.f32 %v2317, 0.0
    %v2326 = vmax.f32 %v2319, 0.0
    %v2327 = vmax.f32 %v2321, 0.0
    %v2328 = vmax.f32 %v2323, 0.0
    %v2329 = vpack.c.bf16 %v2327, %v2325
    %v2330 = vpack.c.bf16 %v2328, %v2326
    %v2331 = vld [vmem:[#allocation8] sm:$0xf]
    %v2332 = vld [vmem:[#allocation8 + $0x4] sm:$0xf]
    %v2333 = vld [vmem:[#allocation8 + $0x8] sm:$0xf]
    %v2334 = vld [vmem:[#allocation8 + $0xc] sm:$0xf]
    %v2335 = vld [vmem:[#allocation8 + $0x10] sm:$0xf]
    %v2336 = vld [vmem:[#allocation8 + $0x14] sm:$0xf]
    %v2337 = vld [vmem:[#allocation8 + $0x18] sm:$0xf]
    %v2338 = vld [vmem:[#allocation8 + $0x1c] sm:$0xf]
    %v2339 = vld [vmem:[#allocation8 + $0x20] sm:$0xf]
    %v2340 = vld [vmem:[#allocation8 + $0x24] sm:$0xf]
    %v2341 = vld [vmem:[#allocation8 + $0x28] sm:$0xf]
    %v2342 = vld [vmem:[#allocation8 + $0x2c] sm:$0xf]
    %v2343 = vld [vmem:[#allocation8 + $0x30] sm:$0xf]
    %v2344 = vld [vmem:[#allocation8 + $0x34] sm:$0xf]
    %v2345 = vld [vmem:[#allocation8 + $0x38] sm:$0xf]
    %v2346 = vld [vmem:[#allocation8 + $0x3c] sm:$0xf]
    %v2347 = vld [vmem:[#allocation8 + $0x40] sm:$0xf]
    %v2348 = vld [vmem:[#allocation8 + $0x44] sm:$0xf]
    %v2349 = vld [vmem:[#allocation8 + $0x48] sm:$0xf]
    %v2350 = vld [vmem:[#allocation8 + $0x4c] sm:$0xf]
    %v2351 = vld [vmem:[#allocation8 + $0x50] sm:$0xf]
    %v2352 = vld [vmem:[#allocation8 + $0x54] sm:$0xf]
    %v2353 = vld [vmem:[#allocation8 + $0x58] sm:$0xf]
    %v2354 = vld [vmem:[#allocation8 + $0x5c] sm:$0xf]
    %v2355 = vld [vmem:[#allocation8 + $0x60] sm:$0xf]
    %v2356 = vld [vmem:[#allocation8 + $0x64] sm:$0xf]
    %v2357 = vld [vmem:[#allocation8 + $0x68] sm:$0xf]
    %v2358 = vld [vmem:[#allocation8 + $0x6c] sm:$0xf]
    %v2359 = vld [vmem:[#allocation8 + $0x70] sm:$0xf]
    %v2360 = vld [vmem:[#allocation8 + $0x74] sm:$0xf]
    %v2361 = vld [vmem:[#allocation8 + $0x78] sm:$0xf]
    %v2362 = vld [vmem:[#allocation8 + $0x7c] sm:$0xf]
    %v2363 = vld [vmem:[%s4 + $0x6] sm:$0x1]
    %v2365 = vlaneseq
    %v2366 = vshrl.u32 %v2365, 7
    %v2367 = vsub.s32 0, %v2366
    %v2368 = vrot.slane %v2363, %v2367
    %v2402 = vunpack.c.l.b16 %v2331
    %v2403 = vunpack.c.l.b16 %v2332
    %v2404 = vunpack.c.l.b16 %v2333
    %v2405 = vunpack.c.l.b16 %v2334
    %v2406 = vunpack.c.l.b16 %v2335
    %v2407 = vunpack.c.l.b16 %v2336
    %v2408 = vunpack.c.l.b16 %v2337
    %v2409 = vunpack.c.l.b16 %v2338
    %v2410 = vunpack.c.l.b16 %v2339
    %v2411 = vunpack.c.l.b16 %v2340
    %v2412 = vunpack.c.l.b16 %v2341
    %v2413 = vunpack.c.l.b16 %v2342
    %v2414 = vunpack.c.l.b16 %v2343
    %v2415 = vunpack.c.l.b16 %v2344
    %v2416 = vunpack.c.l.b16 %v2345
    %v2417 = vunpack.c.l.b16 %v2346
    %v2418 = vunpack.c.l.b16 %v2347
    %v2419 = vunpack.c.l.b16 %v2348
    %v2420 = vunpack.c.l.b16 %v2349
    %v2421 = vunpack.c.l.b16 %v2350
    %v2422 = vunpack.c.l.b16 %v2351
    %v2423 = vunpack.c.l.b16 %v2352
    %v2424 = vunpack.c.l.b16 %v2353
    %v2425 = vunpack.c.l.b16 %v2354
    %v2426 = vunpack.c.l.b16 %v2355
    %v2427 = vunpack.c.l.b16 %v2356
    %v2428 = vunpack.c.l.b16 %v2357
    %v2429 = vunpack.c.l.b16 %v2358
    %v2430 = vunpack.c.l.b16 %v2359
    %v2431 = vunpack.c.l.b16 %v2360
    %v2432 = vunpack.c.l.b16 %v2361
    %v2433 = vunpack.c.l.b16 %v2362
    %v2434 = vpack.c.b16 %v2403, %v2402
    %v2435 = vpack.c.b16 %v2405, %v2404
    %v2436 = vpack.c.b16 %v2407, %v2406
    %v2437 = vpack.c.b16 %v2409, %v2408
    %v2438 = vpack.c.b16 %v2411, %v2410
    %v2439 = vpack.c.b16 %v2413, %v2412
    %v2440 = vpack.c.b16 %v2415, %v2414
    %v2441 = vpack.c.b16 %v2417, %v2416
    %v2442 = vpack.c.b16 %v2419, %v2418
    %v2443 = vpack.c.b16 %v2421, %v2420
    %v2444 = vpack.c.b16 %v2423, %v2422
    %v2445 = vpack.c.b16 %v2425, %v2424
    %v2446 = vpack.c.b16 %v2427, %v2426
    %v2447 = vpack.c.b16 %v2429, %v2428
    %v2448 = vpack.c.b16 %v2431, %v2430
    %v2449 = vpack.c.b16 %v2433, %v2432
    %2466 = vmatprep.subr.bf16.mxu0 0
    %2467 = vmatpush1.bf16.msra.mxu0 %v2434
    %2468 = vmatprep.subr.bf16.mxu0 0
    %2469 = vmatpush1.bf16.msra.mxu0 %v2435
    %2470 = vmatprep.subr.bf16.mxu0 0
    %2471 = vmatpush1.bf16.msra.mxu0 %v2436
    %2472 = vmatprep.subr.bf16.mxu0 0
    %2473 = vmatpush1.bf16.msra.mxu0 %v2437
    %2474 = vmatprep.subr.bf16.mxu0 0
    %2475 = vmatpush1.bf16.msra.mxu0 %v2438
    %2476 = vmatprep.subr.bf16.mxu0 0
    %2477 = vmatpush1.bf16.msra.mxu0 %v2439
    %2478 = vmatprep.subr.bf16.mxu0 0
    %2479 = vmatpush1.bf16.msra.mxu0 %v2440
    %2480 = vmatprep.subr.bf16.mxu0 0
    %2481 = vmatpush1.bf16.msra.mxu0 %v2441
    %2482 = vmatprep.subr.bf16.mxu0 0
    %2483 = vmatpush1.bf16.msra.mxu0 %v2442
    %2484 = vmatprep.subr.bf16.mxu0 0
    %2485 = vmatpush1.bf16.msra.mxu0 %v2443
    %2486 = vmatprep.subr.bf16.mxu0 0
    %2487 = vmatpush1.bf16.msra.mxu0 %v2444
    %2488 = vmatprep.subr.bf16.mxu0 0
    %2489 = vmatpush1.bf16.msra.mxu0 %v2445
    %2490 = vmatprep.subr.bf16.mxu0 0
    %2491 = vmatpush1.bf16.msra.mxu0 %v2446
    %2492 = vmatprep.subr.bf16.mxu0 0
    %2493 = vmatpush1.bf16.msra.mxu0 %v2447
    %2494 = vmatprep.subr.bf16.mxu0 0
    %2495 = vmatpush1.bf16.msra.mxu0 %v2448
    %2496 = vmatprep.subr.bf16.mxu0 0
    %2497 = vmatpush1.bf16.msra.mxu0 %v2449
    %2498 = vmatprep.mubr.bf16.mxu0 %v2330
    %2499 = vmatmul.mubr.bf16.gmra.mrb[0].mxu0 %v2329
    %v2500 = vpop.f32.mrb[0].mxu0
    %v2501 = vadd.f32 %v2368, %v2500
    %v2502 = vpop.f32.mrb[0].mxu0
    %v2503 = vpop.f32.mrb[0].mxu0
    %v2504 = vadd.f32 %v2368, %v2503
    %v2505 = vpop.f32.mrb[0].mxu0
    %2506 = vdwg.mxu0
    %2507 = vst [vmem:[#allocation10] sm:$0xff] %v2501
    %2508 = vst [vmem:[#allocation10 + $0x8] sm:$0xff] %v2504
    // Predicated region
    $region38: #{tpu_custom_call.1} parent=1 // pred_check
      _
    $region39: #{tpu_custom_call.1} parent=1 // pred_check_branch
      %2510 = sbr.rel (0) target = $region41
    $region40: #{tpu_custom_call.1} parent=1 // pred_region
      %s2512 = ssub.s32 256, 256
      %2513 = vsyncadd [#allocation4], %s2512
      %s2514 = sshll.u32 [#allocation10], 4
      %s2515 = int_to_ptr.vmem [resolvable:$true] %s2514
      %2520 = dma.vmem_to_hbm [thread:$0]  %s2515, 256, %s5, [#allocation4], 128, 128, 8
    $region41: #{tpu_custom_call.1} parent=1 // pred_fallthru
      _
    // Predicated region
    $region42: #{tpu_custom_call.1} parent=1 // pred_check
      _
    $region43: #{tpu_custom_call.1} parent=1 // pred_check_branch
      %2522 = sbr.rel (0) target = $region45
    $region44: #{tpu_custom_call.1} parent=1 // pred_region
      %2523 = dma.done [#allocation4], 256
    $region45: #{tpu_custom_call.1} parent=1 // pred_fallthru
      _
    %2524 = vsyncpa [#allocation3], 1
    %2525 = vsyncpa [#allocation6], 1
    %2526 = vsyncpa [#allocation9], 1
    %2527 = vsyncpa [#allocation4], 1

</llo_original>
